<compile_context>
chip_gen: v7x
topology: tpu7x:2x2x1
jax: 0.10.0
libtpu: 0.0.40
codegen_flags: <defaults>
</compile_context>

<pallas_src>
import functools

import jax
import jax.numpy as jnp
import numpy as np
from jax.experimental import pallas as pl
from jax.experimental.pallas import tpu as pltpu


def _make_kernel(has_pool: bool):
    """Kernel for one (batch-block, H-tile) of the space-to-depth input.

    Refs (VMEM):
      xs_main_ref : (bb, ht, wp, 4*Cin)   main rows of the s2d padded input
      xs_halo_ref : (bb, 1,  wp, 4*Cin)   one halo row below the tile
      wt_ref      : (4, 4*Cin, Cout)      per-tap conv weights, BN scale folded,
                                          zero columns for the pool channels
      p_ref       : (Cin, Cout)           pool placement matrix (BN scale folded)
      shift_ref   : (1, Cout)             fused shift = beta - mean*scale (+bias)
      o_ref       : (bb*ht*w_out, Cout)
      xs_scr      : (bb, ht+1, wp, 4*Cin) VMEM scratch: tile rows + halo row
    """

    def kernel(xs_main_ref, xs_halo_ref, wt_ref, *rest):
        if has_pool:
            p_ref, shift_ref, o_ref, xs_scr = rest
        else:
            shift_ref, o_ref, xs_scr = rest

        bb, ht, wp, c4 = xs_main_ref.shape
        w_out = wp - 1
        cin = c4 // 4
        m = bb * ht * w_out
        c_out = o_ref.shape[-1]

        # Assemble the (ht + 1)-row working strip (1-row halo) in VMEM scratch.
        xs_scr[:, 0:ht, :, :] = xs_main_ref[...]
        xs_scr[:, ht:ht + 1, :, :] = xs_halo_ref[...]

        # 3x3 stride-2 conv == 2x2 stride-1 conv on the space-to-depth input:
        # 4 contiguous taps, each a K = 4*Cin matmul accumulated in f32.
        # TODO(synk): verify via MLIR dump that the dj=1 slices do not add
        #             per-tap relayout copies (pltpu.roll fallback if they do).
        acc = jnp.zeros((m, c_out), jnp.float32)
        for idx, (di, dj) in enumerate(((0, 0), (0, 1), (1, 0), (1, 1))):
            tap = xs_scr[:, di:di + ht, dj:dj + w_out, :]
            acc = acc + jnp.dot(tap.reshape(m, c4), wt_ref[idx],
                                preferred_element_type=jnp.float32)

        if has_pool:
            # 2x2 stride-2 max-pool of the *unpadded* input == elementwise max of
            # 4 contiguous channel-group slices of the space-to-depth tensor.
            # Max is computed in f32 (v5e VPU has no bf16) and cast back
            # losslessly before the placement matmul.
            p00 = xs_scr[:, 0:ht, 0:w_out, 3 * cin:4 * cin].astype(jnp.float32)
            p01 = xs_scr[:, 0:ht, 1:wp, 2 * cin:3 * cin].astype(jnp.float32)
            p10 = xs_scr[:, 1:ht + 1, 0:w_out, 1 * cin:2 * cin].astype(jnp.float32)
            p11 = xs_scr[:, 1:ht + 1, 1:wp, 0:cin].astype(jnp.float32)
            pool = jnp.maximum(jnp.maximum(p00, p01), jnp.maximum(p10, p11))
            pool = pool.astype(xs_scr.dtype)
            acc = acc + jnp.dot(pool.reshape(m, cin), p_ref[...],
                                preferred_element_type=jnp.float32)

        # Fused shift (+ conv bias) and ReLU; single full-block store.
        o_ref[...] = jnp.maximum(acc + shift_ref[...], 0.0).astype(o_ref.dtype)

    return kernel


def _pick_blocks(n, h_out, w_out, block_bytes, budget=12 << 20, min_steps=2):
    """Pick (bb, ht): largest block under the VMEM budget keeping >= min_steps
    grid steps (both v7x TensorCores busy) when possible.  Only one of
    (batch, H) is tiled so the flat output block stays contiguous."""
    total_rows = n * h_out * w_out

    def fits(bb, ht):
        m_rows = bb * ht * w_out
        return (block_bytes(bb, ht) <= budget
                and (m_rows % 8 == 0 or m_rows == total_rows))

    n_divs = sorted((d for d in range(1, n + 1) if n % d == 0), reverse=True)
    h_divs = sorted((d for d in range(1, h_out + 1) if h_out % d == 0), reverse=True)
    candidates = ([(bb, h_out) for bb in n_divs]
                  + [(1, ht) for ht in h_divs if ht != h_out])
    fitting = [c for c in candidates if fits(*c)]
    if not fitting:
        return 1, 1
    for bb, ht in fitting:                      # largest blocks first
        if (n // bb) * (h_out // ht) >= min_steps:
            return bb, ht
    return fitting[0]                           # cannot reach min_steps; use largest


def downsampling_block(x_nchw, conv_w, conv_b, gamma, beta, run_mean, run_var,
                       eps=1e-5, compute_dtype=jnp.bfloat16):
    """Forward pass of DownSamplingBlock.  Input/output are NCHW (PyTorch conv.)."""
    n, c_in, h, w = x_nchw.shape
    assert h % 2 == 0 and w % 2 == 0, "H and W must be even"
    c_conv = conv_w.shape[0]
    c_out = gamma.shape[0]
    has_pool = c_conv < c_out                    # the in_channel <= out_channel branch
    if has_pool:
        assert c_out - c_conv == c_in
    h_out, w_out = h // 2, w // 2
    hp, wp = h_out + 1, w_out + 1
    c4 = 4 * c_in

    # ---- glue: pad + single 6-D transpose == zero-pad + space-to-depth (bf16) ----
    # xs[n, i, j, (r*2+s)*Cin + c] = x_pad[n, c, 2i+r, 2j+s]
    x = x_nchw.astype(compute_dtype)
    x_pad = jnp.pad(x, ((0, 0), (0, 0), (1, 1), (1, 1)))
    xs = jnp.transpose(x_pad.reshape(n, c_in, hp, 2, wp, 2),
                       (0, 2, 4, 3, 5, 1)).reshape(n, hp, wp, c4)

    # conv weight -> 4 taps of a 2x2 conv over xs; tap (di, dj) uses original tap
    # (kh, kw) = (2*di + r, 2*dj + s), zero when kh == 3 or kw == 3.
    w4 = jnp.pad(conv_w, ((0, 0), (0, 0), (0, 1), (0, 1)))      # (Cconv,Cin,4,4)
    w6 = w4.reshape(c_conv, c_in, 2, 2, 2, 2)                   # (o,c,di,r,dj,s)
    w_taps = jnp.transpose(w6, (2, 4, 3, 5, 1, 0)).reshape(4, c4, c_conv)

    scale = gamma / jnp.sqrt(run_var + eps)
    shift = beta - run_mean * scale
    scale_c, shift_c = scale[:c_conv], shift[:c_conv]
    w_taps = w_taps * scale_c[None, None, :]                    # fold BN scale
    shift_vec = shift_c + conv_b * scale_c                      # fold conv bias
    if has_pool:
        scale_p, shift_p = scale[c_conv:], shift[c_conv:]
        w_taps = jnp.pad(w_taps, ((0, 0), (0, 0), (0, c_out - c_conv)))
        p_mat = jnp.pad(jnp.diag(scale_p), ((0, 0), (c_conv, 0)))   # (Cin, Cout)
        shift_vec = jnp.concatenate([shift_vec, shift_p])
    shift_vec = shift_vec.reshape(1, c_out).astype(jnp.float32)
    w_taps = w_taps.astype(compute_dtype)

    # ---- VMEM-budgeted block selection (double-buffered in/out + scratch) ----
    in_bytes = np.dtype(compute_dtype).itemsize
    out_bytes = np.dtype(x_nchw.dtype).itemsize

    def block_bytes(bb, ht):
        main = bb * ht * wp * c4 * in_bytes
        halo = bb * 1 * wp * c4 * in_bytes
        scr = bb * (ht + 1) * wp * c4 * in_bytes
        out = bb * ht * w_out * c_out * out_bytes
        wgt = 4 * c4 * c_out * in_bytes + c_in * c_out * in_bytes + c_out * 4
        return 2 * (main + halo + out) + scr + 2 * wgt

    bb, ht = _pick_blocks(n, h_out, w_out, block_bytes)
    n_ht = h_out // ht
    grid = (n // bb, n_ht)

    in_specs = [
        pl.BlockSpec((bb, ht, wp, c4), lambda b, hh: (b, hh, 0, 0)),
        pl.BlockSpec((bb, 1, wp, c4), lambda b, hh: (b, (hh + 1) * ht, 0, 0)),
        pl.BlockSpec((4, c4, c_out), lambda b, hh: (0, 0, 0)),
    ]
    args = [xs, xs, w_taps]
    if has_pool:
        in_specs.append(pl.BlockSpec((c_in, c_out), lambda b, hh: (0, 0)))
        args.append(p_mat.astype(compute_dtype))
    in_specs.append(pl.BlockSpec((1, c_out), lambda b, hh: (0, 0)))
    args.append(shift_vec)

    flops = 2 * n * h_out * w_out * c4 * c_out * 4
    if has_pool:
        flops += 2 * n * h_out * w_out * c_in * c_out + 3 * n * h_out * w_out * c_in
    bytes_accessed = (xs.size * in_bytes
                      + n * h_out * w_out * c_out * out_bytes
                      + w_taps.size * in_bytes)

    out_flat = pl.pallas_call(
        _make_kernel(has_pool),
        out_shape=jax.ShapeDtypeStruct((n * h_out * w_out, c_out), x_nchw.dtype),
        grid=grid,
        in_specs=in_specs,
        out_specs=pl.BlockSpec((bb * ht * w_out, c_out),
                               lambda b, hh: (b * n_ht + hh, 0)),
        scratch_shapes=[pltpu.VMEM((bb, ht + 1, wp, c4), compute_dtype)],
        compiler_params=pltpu.CompilerParams(
            dimension_semantics=("parallel", "parallel"),
            vmem_limit_bytes=32 * 1024 * 1024),
        cost_estimate=pl.CostEstimate(flops=flops, transcendentals=0,
                                      bytes_accessed=int(bytes_accessed)),
    )(*args)

    out = out_flat.reshape(n, h_out, w_out, c_out)
    return jnp.transpose(out, (0, 3, 1, 2))


def reference(x, conv_w, conv_b, gamma, beta, run_mean, run_var, eps=1e-5):
    """Pure-JAX reference mirroring the PyTorch forward (eval-mode BN)."""
    conv = jax.lax.conv_general_dilated(
        x, conv_w, window_strides=(2, 2), padding=((1, 1), (1, 1)),
        dimension_numbers=("NCHW", "OIHW", "NCHW"))
    conv = conv + conv_b[None, :, None, None]
    n, c, h, w = x.shape
    if conv.shape[1] < gamma.shape[0]:
        pool = x.reshape(n, c, h // 2, 2, w // 2, 2).max(axis=(3, 5))
        y = jnp.concatenate([conv, pool], axis=1)
    else:
        y = conv
    scale = gamma / jnp.sqrt(run_var + eps)
    shift = beta - run_mean * scale
    y = y * scale[None, :, None, None] + shift[None, :, None, None]
    return jnp.maximum(y, 0.0)


if __name__ == "__main__":
    key = jax.random.PRNGKey(0)
    keys = jax.random.split(key, 14)
    fwd = jax.jit(downsampling_block, static_argnames=("compute_dtype",))

    # --- branch 1: in_channel <= out_channel  (conv(12ch) || maxpool(4ch)) ---
    N, C_IN, H, W = 2, 4, 16, 16
    C_OUT = 16
    C_CONV = C_OUT - C_IN
    x = jax.random.normal(keys[0], (N, C_IN, H, W), jnp.float32)
    conv_w = jax.random.normal(keys[1], (C_CONV, C_IN, 3, 3), jnp.float32) * 0.1
    conv_b = jax.random.normal(keys[2], (C_CONV,), jnp.float32) * 0.1
    gamma = jax.random.uniform(keys[3], (C_OUT,), jnp.float32, 0.5, 1.5)
    beta = jax.random.normal(keys[4], (C_OUT,), jnp.float32) * 0.1
    run_mean = jax.random.normal(keys[5], (C_OUT,), jnp.float32) * 0.1
    run_var = jax.random.uniform(keys[6], (C_OUT,), jnp.float32, 0.5, 1.5)

    ref1 = reference(x, conv_w, conv_b, gamma, beta, run_mean, run_var)

    # default bf16 streaming path (perf configuration)
    out1 = jax.block_until_ready(
        fwd(x, conv_w, conv_b, gamma, beta, run_mean, run_var))
    assert out1.shape == (N, C_OUT, H // 2, W // 2), out1.shape
    np.testing.assert_allclose(np.asarray(out1), np.asarray(ref1),
                               rtol=5e-2, atol=5e-2)

    # f32 path (tight numerical check of the kernel structure)
    out1_f32 = jax.block_until_ready(
        fwd(x, conv_w, conv_b, gamma, beta, run_mean, run_var,
            compute_dtype=jnp.float32))
    np.testing.assert_allclose(np.asarray(out1_f32), np.asarray(ref1),
                               rtol=1e-4, atol=1e-4)

    # --- branch 2: in_channel > out_channel  (conv only, no maxpool) ---
    C_IN2, C_OUT2 = 32, 16
    x2 = jax.random.normal(keys[7], (N, C_IN2, H, W), jnp.float32)
    conv_w2 = jax.random.normal(keys[8], (C_OUT2, C_IN2, 3, 3), jnp.float32) * 0.1
    conv_b2 = jax.random.normal(keys[9], (C_OUT2,), jnp.float32) * 0.1
    gamma2 = jax.random.uniform(keys[10], (C_OUT2,), jnp.float32, 0.5, 1.5)
    beta2 = jax.random.normal(keys[11], (C_OUT2,), jnp.float32) * 0.1
    mean2 = jax.random.normal(keys[12], (C_OUT2,), jnp.float32) * 0.1
    var2 = jax.random.uniform(keys[13], (C_OUT2,), jnp.float32, 0.5, 1.5)

    ref2 = reference(x2, conv_w2, conv_b2, gamma2, beta2, mean2, var2)

    out2 = jax.block_until_ready(
        fwd(x2, conv_w2, conv_b2, gamma2, beta2, mean2, var2))
    np.testing.assert_allclose(np.asarray(out2), np.asarray(ref2),
                               rtol=5e-2, atol=5e-2)

    out2_f32 = jax.block_until_ready(
        fwd(x2, conv_w2, conv_b2, gamma2, beta2, mean2, var2,
            compute_dtype=jnp.float32))
    np.testing.assert_allclose(np.asarray(out2_f32), np.asarray(ref2),
                               rtol=1e-4, atol=1e-4)

    print("KERNEL_OK")
</pallas_src>

<mosaic_0001>
module attributes {stable_mosaic.version = 11 : i64} {
  func.func @kernel(%arg0: i32, %arg1: i32, %arg2: memref<1x8x9x16xbf16, #tpu.memory_space<vmem>>, %arg3: memref<1x1x9x16xbf16, #tpu.memory_space<vmem>>, %arg4: memref<4x16x16xbf16, #tpu.memory_space<vmem>>, %arg5: memref<4x16xbf16, #tpu.memory_space<vmem>>, %arg6: memref<1x16xf32, #tpu.memory_space<vmem>>, %arg7: memref<64x16xf32, #tpu.memory_space<vmem>>, %arg8: memref<1x9x9x16xbf16, #tpu.memory_space<vmem>>) attributes {dimension_semantics = [#tpu.dimension_semantics<parallel>, #tpu.dimension_semantics<parallel>], iteration_bounds = array<i64: 2, 1>, scalar_prefetch = 0 : i64, scratch_operands = 1 : i64, tpu.core_type = #tpu.core_type<tc>, window_params = [{transform_indices = @transform_0, window_bounds = array<i64: 1, 8, 9, 16>}, {transform_indices = @transform_1, window_bounds = array<i64: 1, 1, 9, 16>}, {pipeline_mode = #tpu.pipeline_mode<synchronous>, transform_indices = @transform_2, window_bounds = array<i64: 4, 16, 16>}, {pipeline_mode = #tpu.pipeline_mode<synchronous>, transform_indices = @transform_3, window_bounds = array<i64: 4, 16>}, {pipeline_mode = #tpu.pipeline_mode<synchronous>, transform_indices = @transform_4, window_bounds = array<i64: 1, 16>}, {transform_indices = @transform_5, window_bounds = array<i64: 64, 16>}]} {
    %c0 = arith.constant 0 : index
    %c0_0 = arith.constant 0 : index
    %c0_1 = arith.constant 0 : index
    %c0_2 = arith.constant 0 : index
    %0 = vector.load %arg2[%c0, %c0_0, %c0_1, %c0_2] : memref<1x8x9x16xbf16, #tpu.memory_space<vmem>>, vector<1x8x9x16xbf16>
    %c0_3 = arith.constant 0 : index
    %c0_4 = arith.constant 0 : index
    %c0_5 = arith.constant 0 : index
    %c0_6 = arith.constant 0 : index
    %1 = vector.load %arg8[%c0_3, %c0_4, %c0_5, %c0_6] : memref<1x9x9x16xbf16, #tpu.memory_space<vmem>>, vector<1x8x9x16xbf16>
    tpu.vector_store %arg8[%c0_3, %c0_4, %c0_5, %c0_6], %0 {strides = array<i32>} : memref<1x9x9x16xbf16, #tpu.memory_space<vmem>>, vector<1x8x9x16xbf16>,
    %c0_7 = arith.constant 0 : index
    %c0_8 = arith.constant 0 : index
    %c0_9 = arith.constant 0 : index
    %c0_10 = arith.constant 0 : index
    %2 = vector.load %arg3[%c0_7, %c0_8, %c0_9, %c0_10] : memref<1x1x9x16xbf16, #tpu.memory_space<vmem>>, vector<1x1x9x16xbf16>
    %c0_11 = arith.constant 0 : index
    %c8 = arith.constant 8 : index
    %c0_12 = arith.constant 0 : index
    %c0_13 = arith.constant 0 : index
    %3 = vector.load %arg8[%c0_11, %c8, %c0_12, %c0_13] : memref<1x9x9x16xbf16, #tpu.memory_space<vmem>>, vector<1x1x9x16xbf16>
    tpu.vector_store %arg8[%c0_11, %c8, %c0_12, %c0_13], %2 {strides = array<i32>} : memref<1x9x9x16xbf16, #tpu.memory_space<vmem>>, vector<1x1x9x16xbf16>,
    %cst = arith.constant 0.000000e+00 : f32
    %4 = vector.broadcast %cst : f32 to vector<64x16xf32>
    %c0_14 = arith.constant 0 : index
    %c0_15 = arith.constant 0 : index
    %c0_16 = arith.constant 0 : index
    %c0_17 = arith.constant 0 : index
    %5 = vector.load %arg8[%c0_14, %c0_15, %c0_16, %c0_17] : memref<1x9x9x16xbf16, #tpu.memory_space<vmem>>, vector<1x8x8x16xbf16>
    %6 = vector.shape_cast %5 : vector<1x8x8x16xbf16> to vector<64x16xbf16>
    %c0_18 = arith.constant 0 : index
    %c0_19 = arith.constant 0 : index
    %c0_20 = arith.constant 0 : index
    %7 = vector.load %arg4[%c0_18, %c0_19, %c0_20] : memref<4x16x16xbf16, #tpu.memory_space<vmem>>, vector<1x16x16xbf16>
    %8 = vector.shape_cast %7 : vector<1x16x16xbf16> to vector<16x16xbf16>
    %cst_21 = arith.constant dense<0.000000e+00> : vector<64x16xf32>
    %9 = tpu.matmul %6, %8, %cst_21 {dimension_numbers = #tpu.dot_dimension_numbers<[1], [0], [0], [1], [0, 0, 1, 1], [], []>} : vector<64x16xbf16>, vector<16x16xbf16>, vector<64x16xf32> -> vector<64x16xf32>
    %10 = arith.addf %4, %9 : vector<64x16xf32>
    %c0_22 = arith.constant 0 : index
    %c0_23 = arith.constant 0 : index
    %c1 = arith.constant 1 : index
    %c0_24 = arith.constant 0 : index
    %11 = vector.load %arg8[%c0_22, %c0_23, %c1, %c0_24] : memref<1x9x9x16xbf16, #tpu.memory_space<vmem>>, vector<1x8x8x16xbf16>
    %12 = vector.shape_cast %11 : vector<1x8x8x16xbf16> to vector<64x16xbf16>
    %c1_25 = arith.constant 1 : index
    %c0_26 = arith.constant 0 : index
    %c0_27 = arith.constant 0 : index
    %13 = vector.load %arg4[%c1_25, %c0_26, %c0_27] : memref<4x16x16xbf16, #tpu.memory_space<vmem>>, vector<1x16x16xbf16>
    %14 = vector.shape_cast %13 : vector<1x16x16xbf16> to vector<16x16xbf16>
    %cst_28 = arith.constant dense<0.000000e+00> : vector<64x16xf32>
    %15 = tpu.matmul %12, %14, %cst_28 {dimension_numbers = #tpu.dot_dimension_numbers<[1], [0], [0], [1], [0, 0, 1, 1], [], []>} : vector<64x16xbf16>, vector<16x16xbf16>, vector<64x16xf32> -> vector<64x16xf32>
    %16 = arith.addf %10, %15 : vector<64x16xf32>
    %c0_29 = arith.constant 0 : index
    %c1_30 = arith.constant 1 : index
    %c0_31 = arith.constant 0 : index
    %c0_32 = arith.constant 0 : index
    %17 = vector.load %arg8[%c0_29, %c1_30, %c0_31, %c0_32] : memref<1x9x9x16xbf16, #tpu.memory_space<vmem>>, vector<1x8x8x16xbf16>
    %18 = vector.shape_cast %17 : vector<1x8x8x16xbf16> to vector<64x16xbf16>
    %c2 = arith.constant 2 : index
    %c0_33 = arith.constant 0 : index
    %c0_34 = arith.constant 0 : index
    %19 = vector.load %arg4[%c2, %c0_33, %c0_34] : memref<4x16x16xbf16, #tpu.memory_space<vmem>>, vector<1x16x16xbf16>
    %20 = vector.shape_cast %19 : vector<1x16x16xbf16> to vector<16x16xbf16>
    %cst_35 = arith.constant dense<0.000000e+00> : vector<64x16xf32>
    %21 = tpu.matmul %18, %20, %cst_35 {dimension_numbers = #tpu.dot_dimension_numbers<[1], [0], [0], [1], [0, 0, 1, 1], [], []>} : vector<64x16xbf16>, vector<16x16xbf16>, vector<64x16xf32> -> vector<64x16xf32>
    %22 = arith.addf %16, %21 : vector<64x16xf32>
    %c0_36 = arith.constant 0 : index
    %c1_37 = arith.constant 1 : index
    %c1_38 = arith.constant 1 : index
    %c0_39 = arith.constant 0 : index
    %23 = vector.load %arg8[%c0_36, %c1_37, %c1_38, %c0_39] : memref<1x9x9x16xbf16, #tpu.memory_space<vmem>>, vector<1x8x8x16xbf16>
    %24 = vector.shape_cast %23 : vector<1x8x8x16xbf16> to vector<64x16xbf16>
    %c3 = arith.constant 3 : index
    %c0_40 = arith.constant 0 : index
    %c0_41 = arith.constant 0 : index
    %25 = vector.load %arg4[%c3, %c0_40, %c0_41] : memref<4x16x16xbf16, #tpu.memory_space<vmem>>, vector<1x16x16xbf16>
    %26 = vector.shape_cast %25 : vector<1x16x16xbf16> to vector<16x16xbf16>
    %cst_42 = arith.constant dense<0.000000e+00> : vector<64x16xf32>
    %27 = tpu.matmul %24, %26, %cst_42 {dimension_numbers = #tpu.dot_dimension_numbers<[1], [0], [0], [1], [0, 0, 1, 1], [], []>} : vector<64x16xbf16>, vector<16x16xbf16>, vector<64x16xf32> -> vector<64x16xf32>
    %28 = arith.addf %22, %27 : vector<64x16xf32>
    %c0_43 = arith.constant 0 : index
    %c0_44 = arith.constant 0 : index
    %c0_45 = arith.constant 0 : index
    %c12 = arith.constant 12 : index
    %29 = vector.load %arg8[%c0_43, %c0_44, %c0_45, %c12] : memref<1x9x9x16xbf16, #tpu.memory_space<vmem>>, vector<1x8x8x4xbf16>
    %30 = arith.extf %29 : vector<1x8x8x4xbf16> to vector<1x8x8x4xf32>
    %c0_46 = arith.constant 0 : index
    %c0_47 = arith.constant 0 : index
    %c1_48 = arith.constant 1 : index
    %c8_49 = arith.constant 8 : index
    %31 = vector.load %arg8[%c0_46, %c0_47, %c1_48, %c8_49] : memref<1x9x9x16xbf16, #tpu.memory_space<vmem>>, vector<1x8x8x4xbf16>
    %32 = arith.extf %31 : vector<1x8x8x4xbf16> to vector<1x8x8x4xf32>
    %c0_50 = arith.constant 0 : index
    %c1_51 = arith.constant 1 : index
    %c0_52 = arith.constant 0 : index
    %c4 = arith.constant 4 : index
    %33 = vector.load %arg8[%c0_50, %c1_51, %c0_52, %c4] : memref<1x9x9x16xbf16, #tpu.memory_space<vmem>>, vector<1x8x8x4xbf16>
    %34 = arith.extf %33 : vector<1x8x8x4xbf16> to vector<1x8x8x4xf32>
    %c0_53 = arith.constant 0 : index
    %c1_54 = arith.constant 1 : index
    %c1_55 = arith.constant 1 : index
    %c0_56 = arith.constant 0 : index
    %35 = vector.load %arg8[%c0_53, %c1_54, %c1_55, %c0_56] : memref<1x9x9x16xbf16, #tpu.memory_space<vmem>>, vector<1x8x8x4xbf16>
    %36 = arith.extf %35 : vector<1x8x8x4xbf16> to vector<1x8x8x4xf32>
    %37 = arith.maximumf %30, %32 : vector<1x8x8x4xf32>
    %38 = arith.maximumf %34, %36 : vector<1x8x8x4xf32>
    %39 = arith.maximumf %37, %38 : vector<1x8x8x4xf32>
    %40 = arith.truncf %39 : vector<1x8x8x4xf32> to vector<1x8x8x4xbf16>
    %41 = vector.shape_cast %40 : vector<1x8x8x4xbf16> to vector<64x4xbf16>
    %c0_57 = arith.constant 0 : index
    %c0_58 = arith.constant 0 : index
    %42 = vector.load %arg5[%c0_57, %c0_58] : memref<4x16xbf16, #tpu.memory_space<vmem>>, vector<4x16xbf16>
    %cst_59 = arith.constant dense<0.000000e+00> : vector<64x16xf32>
    %43 = tpu.matmul %41, %42, %cst_59 {dimension_numbers = #tpu.dot_dimension_numbers<[1], [0], [0], [1], [0, 0, 1, 1], [], []>} : vector<64x4xbf16>, vector<4x16xbf16>, vector<64x16xf32> -> vector<64x16xf32>
    %44 = arith.addf %28, %43 : vector<64x16xf32>
    %c0_60 = arith.constant 0 : index
    %c0_61 = arith.constant 0 : index
    %45 = vector.load %arg6[%c0_60, %c0_61] : memref<1x16xf32, #tpu.memory_space<vmem>>, vector<1x16xf32>
    %46 = vector.broadcast %45 : vector<1x16xf32> to vector<64x16xf32>
    %47 = arith.addf %44, %46 : vector<64x16xf32>
    %cst_62 = arith.constant 0.000000e+00 : f32
    %48 = vector.broadcast %cst_62 : f32 to vector<64x16xf32>
    %49 = arith.maximumf %47, %48 : vector<64x16xf32>
    %c0_63 = arith.constant 0 : index
    %c0_64 = arith.constant 0 : index
    %50 = vector.load %arg7[%c0_63, %c0_64] : memref<64x16xf32, #tpu.memory_space<vmem>>, vector<64x16xf32>
    tpu.vector_store %arg7[%c0_63, %c0_64], %49 {strides = array<i32>} : memref<64x16xf32, #tpu.memory_space<vmem>>, vector<64x16xf32>,
    return
  }
  func.func @transform_0(%arg0: i32, %arg1: i32) -> (i32, i32, i32, i32) {
    %c0_i32 = arith.constant 0 : i32
    %c0_i32_0 = arith.constant 0 : i32
    %c0_i32_1 = arith.constant 0 : i32
    return %arg0, %arg1, %c0_i32, %c0_i32_0 : i32, i32, i32, i32
  }
  func.func @transform_1(%arg0: i32, %arg1: i32) -> (i32, i32, i32, i32) {
    %c1_i32 = arith.constant 1 : i32
    %0 = arith.addi %arg1, %c1_i32 : i32
    %c8_i32 = arith.constant 8 : i32
    %1 = arith.muli %0, %c8_i32 : i32
    %c0_i32 = arith.constant 0 : i32
    %c0_i32_0 = arith.constant 0 : i32
    %c0_i32_1 = arith.constant 0 : i32
    return %arg0, %1, %c0_i32, %c0_i32_0 : i32, i32, i32, i32
  }
  func.func @transform_2(%arg0: i32, %arg1: i32) -> (i32, i32, i32) {
    %c0_i32 = arith.constant 0 : i32
    %c0_i32_0 = arith.constant 0 : i32
    %c0_i32_1 = arith.constant 0 : i32
    %c0_i32_2 = arith.constant 0 : i32
    return %c0_i32, %c0_i32_0, %c0_i32_1 : i32, i32, i32
  }
  func.func @transform_3(%arg0: i32, %arg1: i32) -> (i32, i32) {
    %c0_i32 = arith.constant 0 : i32
    %c0_i32_0 = arith.constant 0 : i32
    %c0_i32_1 = arith.constant 0 : i32
    return %c0_i32, %c0_i32_0 : i32, i32
  }
  func.func @transform_4(%arg0: i32, %arg1: i32) -> (i32, i32) {
    %c0_i32 = arith.constant 0 : i32
    %c0_i32_0 = arith.constant 0 : i32
    %c0_i32_1 = arith.constant 0 : i32
    return %c0_i32, %c0_i32_0 : i32, i32
  }
  func.func @transform_5(%arg0: i32, %arg1: i32) -> (i32, i32) {
    %c1_i32 = arith.constant 1 : i32
    %0 = arith.muli %arg0, %c1_i32 : i32
    %1 = arith.addi %0, %arg1 : i32
    %c0_i32 = arith.constant 0 : i32
    %c0_i32_0 = arith.constant 0 : i32
    return %1, %c0_i32 : i32, i32
  }
}

</mosaic_0001>

<llo_original>
// kernel: downsampling_block.1
$region0: #{downsampling_block.1}
  #allocation0 [shape = 'u32[]', space=smem, size = 0x4, offset = 0x4, fixed_abs, tag = 'smem constant byte address 0x4 - core index']
  #allocation1 [shape = 'u32[144,128]{1,0:T(1,128)}', space=vmem, size = 0x12000, scoped, tag = 'internal scratch']
  #allocation2 [shape = 'bf16[1,9,9,16]{3,2,1,0:T(8,128)(2,1)}', space=vmem, size = 0x9000, scoped, tag = 'scratch operand']
  %s0 = inlined_call_operand.vmem [shape: bf16[2,9,9,16], index: 0, kind: input, shape index: {}, may-alias: {0,1}]
  %s1 = inlined_call_operand.vmem [shape: bf16[2,9,9,16], index: 1, kind: input, shape index: {}, may-alias: {0,1}]
  %s2 = inlined_call_operand.vmem [shape: bf16[4,16,16], index: 2, kind: input, shape index: {}]
  %s3 = inlined_call_operand.vmem [shape: bf16[4,16], index: 3, kind: input, shape index: {}]
  %s4 = inlined_call_operand.vmem [shape: f32[1,16], index: 4, kind: input, shape index: {}]
  %s5 = inlined_call_operand.hbm [shape: f32[128,16], index: 5, kind: output, shape index: {}]
  %s6 = sld [smem:[#allocation0]]
  $region53: #{downsampling_block.1} parent=0
    _
  %s8 = ssub.s32 1, %s6
  %s9 = scalar_select 0, %s8, %s6
  $region1: #{downsampling_block.1} parent=0
    #allocation3 [shape = 'u8[65536]{0}', space=vmem, size = 0x10000, scoped, tag = 'output window, operand 0']
    #allocation4 [shape = 's32[2]{0}', space=sflag, size = 0x8, scoped, tag = 'scoped memory for downsampling_block.1']
    %10 = vsyncpa [#allocation4], 0
    %s11 = scalar_lea.sflag [#allocation4], 1
    %12 = vsyncpa %s11, 0
    loop: start=0, step=1, limit=4
    $region2: #{downsampling_block.1} parent=1 // loop_pre_header
      _
    $region3: #{downsampling_block.1} parent=1 // loop_header
      %s14 = sphi 0, %s18
      %p15 = scmp.ge.s32.totalorder %s14, 4
      %s21 = sphi 0, %s33
      %s22 = sphi 0, %s29
      %s23 = sphi 0, %s21
      %s24 = sphi 0, %s22
      %s25 = sphi 0, %s23
      %s26 = sphi 0, %s24
      %s38 = sphi 0, %s40
      %s41 = sphi 0, %s38
      %s42 = sphi 0, %s41
      %s58 = sphi 0, %s42
      %s70 = sphi 0, %s72
      %s73 = sphi 0, %s70
      %s74 = sphi 0, %s73
      %s90 = sphi 0, %s74
      %s94 = sphi 0, %s94
      %s96 = sphi 0, %s94
      %s97 = sphi 0, %s96
      %s111 = sphi 0, %s97
      %s115 = sphi 0, %s115
      %s117 = sphi 0, %s115
      %s118 = sphi 0, %s117
      %s132 = sphi 0, %s118
      %s136 = sphi 0, %s136
      %s138 = sphi 0, %s136
      %s139 = sphi 0, %s138
      %s153 = sphi 0, %s139
      %s161 = sphi 0, %s163
      %s164 = sphi 0, %s161
      %s165 = sphi 0, %s164
      %s181 = sphi 0, %s165
    $region4: #{downsampling_block.1} parent=1 // loop_header_branch
      %17 = sbr.rel (%p15) target = $region8
    $region5: #{downsampling_block.1} parent=1 // loop_body
      %s19 = ssub.s32 %s14, 1
      %s20 = ssub.s32 %s14, 2
      %s27 = sadd.s32 1, %s22
      %p28 = scmp.ge.s32.totalorder %s27, 1
      %s29 = scalar_select %p28, 0, %s27
      %s30 = sadd.s32 1, %s21
      %s31 = scalar_select %p28, %s30, %s21
      %p32 = scmp.ge.s32.totalorder %s31, 2
      %s33 = scalar_select %p32, 0, %s31
      %s34 = ssub.s32 %s21, %s33
      %s35 = ssub.s32 %s22, %s29
      %s36 = sor.u32 %s34, %s35
      %p37 = scmp.eq.s32.totalorder %s36, 0
      %s39 = sadd.s32 %s38, 1
      %s40 = scalar_select %p37, %s38, %s39
      %p43 = pneg %p37
      %p44 = scmp.eq.s32.totalorder %s14, 1
      %p45 = por %p43, %p44
      %p46 = scmp.ne.s32.totalorder %s38, %s41
      %p47 = scmp.eq.s32.totalorder %s14, 0
      %p48 = por %p46, %p47
      %p49 = scmp.ne.s32.totalorder %s38, %s41
      %p50 = scmp.eq.s32.totalorder %s19, 1
      %p51 = por %p49, %p50
      %p52 = scmp.ne.s32.totalorder %s41, %s42
      %p53 = scmp.eq.s32.totalorder %s19, 0
      %p54 = por %p52, %p53
      %p55 = scmp.ne.s32.totalorder %s41, %s42
      %p56 = scmp.eq.s32.totalorder %s20, 1
      %p57 = por %p55, %p56
      %p59 = scmp.ne.s32.totalorder %s42, %s58
      %p60 = scmp.eq.s32.totalorder %s20, 0
      %p61 = por %p59, %p60
      %s62 = sadd.s32 %s22, 1
      %s63 = smul.u32 %s62, 8
      %s64 = sadd.s32 %s29, 1
      %s65 = smul.u32 %s64, 8
      %s66 = ssub.s32 %s21, %s33
      %s67 = ssub.s32 %s63, %s65
      %s68 = sor.u32 %s66, %s67
      %p69 = scmp.eq.s32.totalorder %s68, 0
      %s71 = sadd.s32 %s70, 1
      %s72 = scalar_select %p69, %s70, %s71
      %p75 = pneg %p69
      %p76 = scmp.eq.s32.totalorder %s14, 1
      %p77 = por %p75, %p76
      %p78 = scmp.ne.s32.totalorder %s70, %s73
      %p79 = scmp.eq.s32.totalorder %s14, 0
      %p80 = por %p78, %p79
      %p81 = scmp.ne.s32.totalorder %s70, %s73
      %p82 = scmp.eq.s32.totalorder %s19, 1
      %p83 = por %p81, %p82
      %p84 = scmp.ne.s32.totalorder %s73, %s74
      %p85 = scmp.eq.s32.totalorder %s19, 0
      %p86 = por %p84, %p85
      %p87 = scmp.ne.s32.totalorder %s73, %s74
      %p88 = scmp.eq.s32.totalorder %s20, 1
      %p89 = por %p87, %p88
      %p91 = scmp.ne.s32.totalorder %s74, %s90
      %p92 = scmp.eq.s32.totalorder %s20, 0
      %p93 = por %p91, %p92
      %s95 = sadd.s32 %s94, 1
      %p98 = scmp.eq.s32.totalorder %s14, 1
      %p99 = scmp.ne.s32.totalorder %s94, %s96
      %p100 = scmp.eq.s32.totalorder %s14, 0
      %p101 = por %p99, %p100
      %p102 = scmp.ne.s32.totalorder %s94, %s96
      %p103 = scmp.eq.s32.totalorder %s19, 1
      %p104 = por %p102, %p103
      %p105 = scmp.ne.s32.totalorder %s96, %s97
      %p106 = scmp.eq.s32.totalorder %s19, 0
      %p107 = por %p105, %p106
      %p108 = scmp.ne.s32.totalorder %s96, %s97
      %p109 = scmp.eq.s32.totalorder %s20, 1
      %p110 = por %p108, %p109
      %p112 = scmp.ne.s32.totalorder %s97, %s111
      %p113 = scmp.eq.s32.totalorder %s20, 0
      %p114 = por %p112, %p113
      %s116 = sadd.s32 %s115, 1
      %p119 = scmp.eq.s32.totalorder %s14, 1
      %p120 = scmp.ne.s32.totalorder %s115, %s117
      %p121 = scmp.eq.s32.totalorder %s14, 0
      %p122 = por %p120, %p121
      %p123 = scmp.ne.s32.totalorder %s115, %s117
      %p124 = scmp.eq.s32.totalorder %s19, 1
      %p125 = por %p123, %p124
      %p126 = scmp.ne.s32.totalorder %s117, %s118
      %p127 = scmp.eq.s32.totalorder %s19, 0
      %p128 = por %p126, %p127
      %p129 = scmp.ne.s32.totalorder %s117, %s118
      %p130 = scmp.eq.s32.totalorder %s20, 1
      %p131 = por %p129, %p130
      %p133 = scmp.ne.s32.totalorder %s118, %s132
      %p134 = scmp.eq.s32.totalorder %s20, 0
      %p135 = por %p133, %p134
      %s137 = sadd.s32 %s136, 1
      %p140 = scmp.eq.s32.totalorder %s14, 1
      %p141 = scmp.ne.s32.totalorder %s136, %s138
      %p142 = scmp.eq.s32.totalorder %s14, 0
      %p143 = por %p141, %p142
      %p144 = scmp.ne.s32.totalorder %s136, %s138
      %p145 = scmp.eq.s32.totalorder %s19, 1
      %p146 = por %p144, %p145
      %p147 = scmp.ne.s32.totalorder %s138, %s139
      %p148 = scmp.eq.s32.totalorder %s19, 0
      %p149 = por %p147, %p148
      %p150 = scmp.ne.s32.totalorder %s138, %s139
      %p151 = scmp.eq.s32.totalorder %s20, 1
      %p152 = por %p150, %p151
      %p154 = scmp.ne.s32.totalorder %s139, %s153
      %p155 = scmp.eq.s32.totalorder %s20, 0
      %p156 = por %p154, %p155
      %s157 = sadd.s32 %s21, %s22
      %s158 = sadd.s32 %s33, %s29
      %s159 = ssub.s32 %s157, %s158
      %p160 = scmp.eq.s32.totalorder %s159, 0
      %s162 = sadd.s32 %s161, 1
      %s163 = scalar_select %p160, %s161, %s162
      %p166 = pneg %p160
      %p167 = scmp.eq.s32.totalorder %s14, 1
      %p168 = por %p166, %p167
      %p169 = scmp.ne.s32.totalorder %s161, %s164
      %p170 = scmp.eq.s32.totalorder %s14, 0
      %p171 = por %p169, %p170
      %p172 = scmp.ne.s32.totalorder %s161, %s164
      %p173 = scmp.eq.s32.totalorder %s19, 1
      %p174 = por %p172, %p173
      %p175 = scmp.ne.s32.totalorder %s164, %s165
      %p176 = scmp.eq.s32.totalorder %s19, 0
      %p177 = por %p175, %p176
      %p178 = scmp.ne.s32.totalorder %s164, %s165
      %p179 = scmp.eq.s32.totalorder %s20, 1
      %p180 = por %p178, %p179
      %p182 = scmp.ne.s32.totalorder %s165, %s181
      %p183 = scmp.eq.s32.totalorder %s20, 0
      %p184 = por %p182, %p183
      %p185 = scmp.le.s32.totalorder 1, %s14
      %p186 = scmp.lt.s32.totalorder %s14, 3
      %p187 = pnand %p185, %p186
      %p188 = pneg %p187
      // Predicated region
      $region9: #{downsampling_block.1} parent=5 // pred_check
        _
      $region10: #{downsampling_block.1} parent=5 // pred_check_branch
        %190 = sbr.rel (%p187) target = $region12
      $region11: #{downsampling_block.1} parent=5 // pred_region
        %s191 = ssub.s32 %s14, 1
        // Predicated region
        $region13: #{downsampling_block.1} parent=11 // pred_check
          %p192 = pneg %p107
        $region14: #{downsampling_block.1} parent=11 // pred_check_branch
          %194 = sbr.rel (%p192) target = $region16
        $region15: #{downsampling_block.1} parent=11 // pred_region
          _
        $region16: #{downsampling_block.1} parent=11 // pred_fallthru
          _
        // Predicated region
        $region17: #{downsampling_block.1} parent=11 // pred_check
          %p195 = pneg %p128
        $region18: #{downsampling_block.1} parent=11 // pred_check_branch
          %197 = sbr.rel (%p195) target = $region20
        $region19: #{downsampling_block.1} parent=11 // pred_region
          _
        $region20: #{downsampling_block.1} parent=11 // pred_fallthru
          _
        // Predicated region
        $region21: #{downsampling_block.1} parent=11 // pred_check
          %p198 = pneg %p149
        $region22: #{downsampling_block.1} parent=11 // pred_check_branch
          %200 = sbr.rel (%p198) target = $region24
        $region23: #{downsampling_block.1} parent=11 // pred_region
          _
        $region24: #{downsampling_block.1} parent=11 // pred_fallthru
          _
      $region12: #{downsampling_block.1} parent=5 // pred_fallthru
        _
      %p201 = scmp.lt.s32.totalorder %s14, 2
      // Predicated region
      $region25: #{downsampling_block.1} parent=5 // pred_check
        %p202 = pneg %p201
      $region26: #{downsampling_block.1} parent=5 // pred_check_branch
        %204 = sbr.rel (%p202) target = $region28
      $region27: #{downsampling_block.1} parent=5 // pred_region
        // Predicated region
        $region29: #{downsampling_block.1} parent=27 // pred_check
          %p205 = pneg %p48
        $region30: #{downsampling_block.1} parent=27 // pred_check_branch
          %207 = sbr.rel (%p205) target = $region32
        $region31: #{downsampling_block.1} parent=27 // pred_region
          %s208 = smul.u32 8, %s22
          %s209 = ssub.s32 9, %s208
          %p210 = scmp.lt.s32.totalorder %s209, 8
          %s211 = scalar_select %p210, %s209, 8
          %s212 = smul.u32 64, %s211
          %s213 = smul.u32 %s212, 2
          %p214 = scmp.lt.s32.totalorder %s21, 1
          %s215 = scalar_select %p214, %s21, 1
          %p216 = scmp.lt.s32.totalorder %s208, 8
          %s217 = scalar_select %p216, %s208, 8
          %s218 = smul.addr %s217, 2
          %s219 = smul.addr %s215, 18
          %s220 = sadd.s32 %s218, %s219
          %s221 = smul.addr %s220, 4
          %s222 = scalar_lea.vmem %s0, %s221
          %s223 = smul.u32 8, %s22
          %s224 = ssub.s32 9, %s223
          %p225 = scmp.lt.s32.totalorder %s224, 8
          %s226 = scalar_select %p225, %s224, 8
          %s227 = smul.u32 64, %s226
          %s228 = smul.u32 %s227, 2
        $region32: #{downsampling_block.1} parent=27 // pred_fallthru
          _
        // Predicated region
        $region33: #{downsampling_block.1} parent=27 // pred_check
          %p229 = pneg %p80
        $region34: #{downsampling_block.1} parent=27 // pred_check_branch
          %231 = sbr.rel (%p229) target = $region36
        $region35: #{downsampling_block.1} parent=27 // pred_region
          %s232 = sadd.s32 %s22, 1
          %s233 = smul.u32 %s232, 8
          %p234 = scmp.lt.s32.totalorder %s21, 1
          %s235 = scalar_select %p234, %s21, 1
          %p236 = scmp.lt.s32.totalorder %s233, 8
          %s237 = scalar_select %p236, %s233, 8
          %s238 = smul.addr %s237, 2
          %s239 = smul.addr %s235, 18
          %s240 = sadd.s32 %s238, %s239
          %s241 = smul.addr %s240, 4
          %s242 = scalar_lea.vmem %s1, %s241
          %s243 = sadd.s32 %s22, 1
          %s244 = smul.u32 %s243, 8
        $region36: #{downsampling_block.1} parent=27 // pred_fallthru
          _
      $region28: #{downsampling_block.1} parent=5 // pred_fallthru
        _
      %p245 = scmp.le.s32.totalorder 1, %s14
      %p246 = scmp.lt.s32.totalorder %s14, 3
      %p247 = pnand %p245, %p246
      %p248 = pneg %p247
      // Predicated region
      $region37: #{downsampling_block.1} parent=5 // pred_check
        _
      $region38: #{downsampling_block.1} parent=5 // pred_check_branch
        %250 = sbr.rel (%p247) target = $region40
      $region39: #{downsampling_block.1} parent=5 // pred_region
        %s251 = ssub.s32 %s14, 1
        %s252 = smul.u32 8, %s24
        %s253 = ssub.s32 9, %s252
        %p254 = scmp.lt.s32.totalorder %s253, 8
        %s255 = scalar_select %p254, %s253, 8
        %s256 = smul.u32 64, %s255
        %s257 = smul.u32 %s256, 2
        %p258 = scmp.lt.s32.totalorder %s23, 1
        %s259 = scalar_select %p258, %s23, 1
        %p260 = scmp.lt.s32.totalorder %s252, 8
        %s261 = scalar_select %p260, %s252, 8
        %s262 = smul.addr %s261, 2
        %s263 = smul.addr %s259, 18
        %s264 = sadd.s32 %s262, %s263
        %s265 = smul.addr %s264, 4
        %s266 = scalar_lea.vmem %s0, %s265
        %p267 = pneg %p54
        %p268 = pneg %p51
        %s269 = sadd.s32 %s24, 1
        %s270 = smul.u32 %s269, 8
        %p271 = scmp.lt.s32.totalorder %s23, 1
        %s272 = scalar_select %p271, %s23, 1
        %p273 = scmp.lt.s32.totalorder %s270, 8
        %s274 = scalar_select %p273, %s270, 8
        %s275 = smul.addr %s274, 2
        %s276 = smul.addr %s272, 18
        %s277 = sadd.s32 %s275, %s276
        %s278 = smul.addr %s277, 4
        %s279 = scalar_lea.vmem %s1, %s278
        %p280 = pneg %p86
        %p281 = pneg %p83
        %p282 = pneg %p107
        %p283 = pneg %p104
        %p284 = pneg %p128
        %p285 = pneg %p125
        %p286 = pneg %p149
        %p287 = pneg %p146
        %p288 = pneg %p177
        %p289 = pneg %p174
        %s290 = sand.u32 %s164, 1
        %s291 = scalar_lea.sflag [#allocation4], %s290
        %s292 = sand.u32 %s164, 1
        %s293 = smul.addr %s292, 64
        %s294 = scalar_lea.vmem [#allocation3], %s293
        %s295 = smul.u32 8, %s24
        %s296 = ssub.s32 9, %s295
        %p297 = scmp.lt.s32.totalorder %s296, 8
        %s298 = scalar_select %p297, %s296, 8
        %s299 = smul.u32 64, %s298
        %s300 = smul.u32 %s299, 2
        %p301 = scmp.lt.s32.totalorder %s23, 1
        %s302 = scalar_select %p301, %s23, 1
        %p303 = scmp.lt.s32.totalorder %s295, 8
        %s304 = scalar_select %p303, %s295, 8
        %s305 = smul.addr %s304, 2
        %s306 = smul.addr %s302, 18
        %s307 = sadd.s32 %s305, %s306
        %s308 = smul.addr %s307, 4
        %s309 = scalar_lea.vmem %s0, %s308
        %s310 = smul.u32 8, %s24
        %s311 = ssub.s32 9, %s310
        %p312 = scmp.lt.s32.totalorder %s311, 8
        %s313 = scalar_select %p312, %s311, 8
        %s314 = smul.u32 64, %s313
        %s315 = smul.u32 %s314, 2
        %s316 = sadd.s32 %s24, 1
        %s317 = smul.u32 %s316, 8
        %p318 = scmp.lt.s32.totalorder %s23, 1
        %s319 = scalar_select %p318, %s23, 1
        %p320 = scmp.lt.s32.totalorder %s317, 8
        %s321 = scalar_select %p320, %s317, 8
        %s322 = smul.addr %s321, 2
        %s323 = smul.addr %s319, 18
        %s324 = sadd.s32 %s322, %s323
        %s325 = smul.addr %s324, 4
        %s326 = scalar_lea.vmem %s1, %s325
        %s327 = sadd.s32 %s24, 1
        %s328 = smul.u32 %s327, 8
        %s329 = sadd.s32 %s23, %s24
        %s330 = smul.u32 8, %s329
        %v332 = vld [vmem:[%s309] sm:$0xf]
        %v333 = vld [vmem:[%s309 + $0x4] sm:$0x1]
        %v334 = vld [vmem:[%s309 + $0x8] sm:$0xf]
        %v335 = vld [vmem:[%s309 + $0xc] sm:$0x1]
        %v336 = vld [vmem:[%s309 + $0x10] sm:$0xf]
        %v337 = vld [vmem:[%s309 + $0x14] sm:$0x1]
        %v338 = vld [vmem:[%s309 + $0x18] sm:$0xf]
        %v339 = vld [vmem:[%s309 + $0x1c] sm:$0x1]
        %v340 = vld [vmem:[%s309 + $0x20] sm:$0xf]
        %v341 = vld [vmem:[%s309 + $0x24] sm:$0x1]
        %v342 = vld [vmem:[%s309 + $0x28] sm:$0xf]
        %v343 = vld [vmem:[%s309 + $0x2c] sm:$0x1]
        %v344 = vld [vmem:[%s309 + $0x30] sm:$0xf]
        %v345 = vld [vmem:[%s309 + $0x34] sm:$0x1]
        %v346 = vld [vmem:[%s309 + $0x38] sm:$0xf]
        %v347 = vld [vmem:[%s309 + $0x3c] sm:$0x1]
        %vm348 = vcmask 125952
        %349 = vst.msk [vmem:[#allocation2] sm:$0xf] %vm348, %v332
        %vm350 = vcmask 122880
        %vm351 = vsmask.f32 256
        %vm352 = vmand %vm350, %vm351
        %v353 = vld [vmem:[#allocation2 + $0x4] sm:$0x1]
        %v354 = vsel %vm352, %v333, %v353
        %355 = vst [vmem:[#allocation2 + $0x4] sm:$0x1] %v354
        %356 = vst.msk [vmem:[#allocation2 + $0x8] sm:$0xf] %vm348, %v334
        %v357 = vld [vmem:[#allocation2 + $0xc] sm:$0x1]
        %v358 = vsel %vm352, %v335, %v357
        %359 = vst [vmem:[#allocation2 + $0xc] sm:$0x1] %v358
        %360 = vst.msk [vmem:[#allocation2 + $0x10] sm:$0xf] %vm348, %v336
        %v361 = vld [vmem:[#allocation2 + $0x14] sm:$0x1]
        %v362 = vsel %vm352, %v337, %v361
        %363 = vst [vmem:[#allocation2 + $0x14] sm:$0x1] %v362
        %364 = vst.msk [vmem:[#allocation2 + $0x18] sm:$0xf] %vm348, %v338
        %v365 = vld [vmem:[#allocation2 + $0x1c] sm:$0x1]
        %v366 = vsel %vm352, %v339, %v365
        %367 = vst [vmem:[#allocation2 + $0x1c] sm:$0x1] %v366
        %368 = vst.msk [vmem:[#allocation2 + $0x20] sm:$0xf] %vm348, %v340
        %v369 = vld [vmem:[#allocation2 + $0x24] sm:$0x1]
        %v370 = vsel %vm352, %v341, %v369
        %371 = vst [vmem:[#allocation2 + $0x24] sm:$0x1] %v370
        %372 = vst.msk [vmem:[#allocation2 + $0x28] sm:$0xf] %vm348, %v342
        %v373 = vld [vmem:[#allocation2 + $0x2c] sm:$0x1]
        %v374 = vsel %vm352, %v343, %v373
        %375 = vst [vmem:[#allocation2 + $0x2c] sm:$0x1] %v374
        %376 = vst.msk [vmem:[#allocation2 + $0x30] sm:$0xf] %vm348, %v344
        %v377 = vld [vmem:[#allocation2 + $0x34] sm:$0x1]
        %v378 = vsel %vm352, %v345, %v377
        %379 = vst [vmem:[#allocation2 + $0x34] sm:$0x1] %v378
        %380 = vst.msk [vmem:[#allocation2 + $0x38] sm:$0xf] %vm348, %v346
        %v381 = vld [vmem:[#allocation2 + $0x3c] sm:$0x1]
        %v382 = vsel %vm352, %v347, %v381
        %383 = vst [vmem:[#allocation2 + $0x3c] sm:$0x1] %v382
        %v384 = vld [vmem:[%s326] sm:$0xf]
        %v385 = vld [vmem:[%s326 + $0x4] sm:$0x1]
        %s386 = scalar_lea.vmem [#allocation2], 64
        %387 = vst.msk [vmem:[%s386] sm:$0xf] %vm348, %v384
        %v388 = vld [vmem:[%s386 + $0x4] sm:$0x1]
        %v389 = vsel %vm352, %v385, %v388
        %390 = vst [vmem:[%s386 + $0x4] sm:$0x1] %v389
        %v391 = vld [vmem:[#allocation2] sm:$0xf]
        %v392 = vld [vmem:[#allocation2 + $0x8] sm:$0xf]
        %v393 = vld [vmem:[#allocation2 + $0x10] sm:$0xf]
        %v394 = vld [vmem:[#allocation2 + $0x18] sm:$0xf]
        %v395 = vld [vmem:[#allocation2 + $0x20] sm:$0xf]
        %v396 = vld [vmem:[#allocation2 + $0x28] sm:$0xf]
        %v397 = vld [vmem:[#allocation2 + $0x30] sm:$0xf]
        %v398 = vld [vmem:[#allocation2 + $0x38] sm:$0xf]
        %v399 = vld [vmem:[%s2] sm:$0xf]
        %v400 = vld [vmem:[%s2 + $0x4] sm:$0xf]
        %v401 = vld [vmem:[#allocation2 + $0x4] sm:$0x1]
        %v402 = vld [vmem:[#allocation2 + $0xc] sm:$0x1]
        %v403 = vld [vmem:[#allocation2 + $0x14] sm:$0x1]
        %v404 = vld [vmem:[#allocation2 + $0x1c] sm:$0x1]
        %v405 = vld [vmem:[#allocation2 + $0x24] sm:$0x1]
        %v406 = vld [vmem:[#allocation2 + $0x2c] sm:$0x1]
        %v407 = vld [vmem:[#allocation2 + $0x34] sm:$0x1]
        %v408 = vld [vmem:[#allocation2 + $0x3c] sm:$0x1]
        %vm409 = vsmask.f32 3328
        %vm410 = vsmask.f32 7440
        %vm411 = vmor %vm409, %vm410
        %v413 = vshrl.u32 %v391, 16
        %v415 = vrot.slane %v413, 4
        %v416 = vshll.u32 %v391, 16
        %v418 = vrot.slane %v416, 5
        %v419 = vor.u32 %v415, %v418
        %v420 = vrot.slane %v419, 4
        %v422 = vshll.u32 %v401, 16
        %v424 = vrot.slane %v422, 5
        %v425 = vsel %vm411, %v420, %v424
        %v427 = vshrl.u32 %v392, 16
        %v429 = vrot.slane %v427, 4
        %v430 = vshll.u32 %v392, 16
        %v432 = vrot.slane %v430, 5
        %v433 = vor.u32 %v429, %v432
        %v434 = vrot.slane %v433, 4
        %v436 = vshll.u32 %v402, 16
        %v438 = vrot.slane %v436, 5
        %v439 = vsel %vm411, %v434, %v438
        %v441 = vshrl.u32 %v393, 16
        %v443 = vrot.slane %v441, 4
        %v444 = vshll.u32 %v393, 16
        %v446 = vrot.slane %v444, 5
        %v447 = vor.u32 %v443, %v446
        %v448 = vrot.slane %v447, 4
        %v450 = vshll.u32 %v403, 16
        %v452 = vrot.slane %v450, 5
        %v453 = vsel %vm411, %v448, %v452
        %v455 = vshrl.u32 %v394, 16
        %v457 = vrot.slane %v455, 4
        %v458 = vshll.u32 %v394, 16
        %v460 = vrot.slane %v458, 5
        %v461 = vor.u32 %v457, %v460
        %v462 = vrot.slane %v461, 4
        %v464 = vshll.u32 %v404, 16
        %v466 = vrot.slane %v464, 5
        %v467 = vsel %vm411, %v462, %v466
        %v469 = vshrl.u32 %v395, 16
        %v471 = vrot.slane %v469, 4
        %v472 = vshll.u32 %v395, 16
        %v474 = vrot.slane %v472, 5
        %v475 = vor.u32 %v471, %v474
        %v476 = vrot.slane %v475, 4
        %v478 = vshll.u32 %v405, 16
        %v480 = vrot.slane %v478, 5
        %v481 = vsel %vm411, %v476, %v480
        %v483 = vshrl.u32 %v396, 16
        %v485 = vrot.slane %v483, 4
        %v486 = vshll.u32 %v396, 16
        %v488 = vrot.slane %v486, 5
        %v489 = vor.u32 %v485, %v488
        %v490 = vrot.slane %v489, 4
        %v492 = vshll.u32 %v406, 16
        %v494 = vrot.slane %v492, 5
        %v495 = vsel %vm411, %v490, %v494
        %v497 = vshrl.u32 %v397, 16
        %v499 = vrot.slane %v497, 4
        %v500 = vshll.u32 %v397, 16
        %v502 = vrot.slane %v500, 5
        %v503 = vor.u32 %v499, %v502
        %v504 = vrot.slane %v503, 4
        %v506 = vshll.u32 %v407, 16
        %v508 = vrot.slane %v506, 5
        %v509 = vsel %vm411, %v504, %v508
        %v511 = vshrl.u32 %v398, 16
        %v513 = vrot.slane %v511, 4
        %v514 = vshll.u32 %v398, 16
        %v516 = vrot.slane %v514, 5
        %v517 = vor.u32 %v513, %v516
        %v518 = vrot.slane %v517, 4
        %v520 = vshll.u32 %v408, 16
        %v522 = vrot.slane %v520, 5
        %v523 = vsel %vm411, %v518, %v522
        %s524 = scalar_lea.vmem %s2, 8
        %v525 = vld [vmem:[%s524] sm:$0xf]
        %v526 = vld [vmem:[%s524 + $0x4] sm:$0xf]
        %v527 = vunpack.c.l.b16 %v425
        %v528 = vunpack.c.l.b16 %v439
        %v529 = vunpack.c.l.b16 %v453
        %v530 = vunpack.c.l.b16 %v467
        %v531 = vunpack.c.l.b16 %v481
        %v532 = vunpack.c.l.b16 %v495
        %v533 = vunpack.c.l.b16 %v509
        %v534 = vunpack.c.l.b16 %v523
        %v535 = vpack.c.b16 %v528, %v527
        %v536 = vpack.c.b16 %v530, %v529
        %v537 = vpack.c.b16 %v532, %v531
        %v538 = vpack.c.b16 %v534, %v533
        %v541 = vunpack.c.l.b16 %v525
        %v542 = vunpack.c.l.b16 %v526
        %v543 = vpack.c.b16 %v542, %v541
        %vm545 = vcmask 130048
        %v547 = vsel %vm545, %v535, 0
        %v550 = vsel %vm545, %v536, 0
        %v553 = vsel %vm545, %v537, 0
        %v556 = vsel %vm545, %v538, 0
        %558 = vmatprep.subr.bf16.mxu0 0
        %559 = vmatpush1.bf16.msra.mxu0 %v543
        %560 = vmatprep.subr.bf16.mxu0 0
        %561 = vmatpush1.bf16.msra.mxu0 0
        %562 = vmatprep.subr.bf16.mxu0 0
        %563 = vmatpush1.bf16.msra.mxu0 0
        %564 = vmatprep.subr.bf16.mxu0 0
        %565 = vmatpush1.bf16.msra.mxu0 0
        %566 = vmatprep.subr.bf16.mxu0 0
        %567 = vmatpush1.bf16.msra.mxu0 0
        %568 = vmatprep.subr.bf16.mxu0 0
        %569 = vmatpush1.bf16.msra.mxu0 0
        %570 = vmatprep.subr.bf16.mxu0 0
        %571 = vmatpush1.bf16.msra.mxu0 0
        %572 = vmatprep.subr.bf16.mxu0 0
        %573 = vmatpush1.bf16.msra.mxu0 0
        %574 = vmatprep.subr.bf16.mxu0 0
        %575 = vmatpush1.bf16.msra.mxu0 0
        %576 = vmatprep.subr.bf16.mxu0 0
        %577 = vmatpush1.bf16.msra.mxu0 0
        %578 = vmatprep.subr.bf16.mxu0 0
        %579 = vmatpush1.bf16.msra.mxu0 0
        %580 = vmatprep.subr.bf16.mxu0 0
        %581 = vmatpush1.bf16.msra.mxu0 0
        %582 = vmatprep.subr.bf16.mxu0 0
        %583 = vmatpush1.bf16.msra.mxu0 0
        %584 = vmatprep.subr.bf16.mxu0 0
        %585 = vmatpush1.bf16.msra.mxu0 0
        %586 = vmatprep.subr.bf16.mxu0 0
        %587 = vmatpush1.bf16.msra.mxu0 0
        %588 = vmatprep.subr.bf16.mxu0 0
        %589 = vmatpush1.bf16.msra.mxu0 0
        %590 = vmatprep.mubr.bf16.mxu0 0
        %591 = vmatmul.mubr.bf16.gmra.mrb[0].mxu0 %v547
        %v592 = vpop.f32.mrb[0].mxu0
        %v593 = vadd.f32 0.0, %v592
        %v594 = vpop.f32.mrb[0].mxu0
        %v595 = vpop.f32.mrb[0].mxu0
        %v596 = vadd.f32 0.0, %v595
        %v597 = vpop.f32.mrb[0].mxu0
        %598 = vmatprep.mubr.bf16.mxu0 0
        %599 = vmatmul.mubr.bf16.gmra.mrb[0].mxu0 %v550
        %v600 = vpop.f32.mrb[0].mxu0
        %v601 = vadd.f32 0.0, %v600
        %v602 = vpop.f32.mrb[0].mxu0
        %v603 = vpop.f32.mrb[0].mxu0
        %v604 = vadd.f32 0.0, %v603
        %v605 = vpop.f32.mrb[0].mxu0
        %606 = vmatprep.mubr.bf16.mxu0 0
        %607 = vmatmul.mubr.bf16.gmra.mrb[0].mxu0 %v553
        %v608 = vpop.f32.mrb[0].mxu0
        %v609 = vadd.f32 0.0, %v608
        %v610 = vpop.f32.mrb[0].mxu0
        %v611 = vpop.f32.mrb[0].mxu0
        %v612 = vadd.f32 0.0, %v611
        %v613 = vpop.f32.mrb[0].mxu0
        %614 = vmatprep.mubr.bf16.mxu0 0
        %615 = vmatmul.mubr.bf16.gmra.mrb[0].mxu0 %v556
        %v616 = vpop.f32.mrb[0].mxu0
        %v617 = vadd.f32 0.0, %v616
        %v618 = vpop.f32.mrb[0].mxu0
        %v619 = vpop.f32.mrb[0].mxu0
        %v620 = vadd.f32 0.0, %v619
        %v621 = vpop.f32.mrb[0].mxu0
        %622 = vdwg.mxu0
        %v631 = vunpack.c.l.b16 %v391
        %v632 = vunpack.c.l.b16 %v392
        %v633 = vunpack.c.l.b16 %v393
        %v634 = vunpack.c.l.b16 %v394
        %v635 = vunpack.c.l.b16 %v395
        %v636 = vunpack.c.l.b16 %v396
        %v637 = vunpack.c.l.b16 %v397
        %v638 = vunpack.c.l.b16 %v398
        %v639 = vpack.c.b16 %v632, %v631
        %v640 = vpack.c.b16 %v634, %v633
        %v641 = vpack.c.b16 %v636, %v635
        %v642 = vpack.c.b16 %v638, %v637
        %v645 = vunpack.c.l.b16 %v399
        %v646 = vunpack.c.l.b16 %v400
        %v647 = vpack.c.b16 %v646, %v645
        %v650 = vsel %vm545, %v639, 0
        %v653 = vsel %vm545, %v640, 0
        %v656 = vsel %vm545, %v641, 0
        %v659 = vsel %vm545, %v642, 0
        %661 = vmatprep.subr.bf16.mxu0 0
        %662 = vmatpush1.bf16.msra.mxu0 %v647
        %663 = vmatprep.subr.bf16.mxu0 0
        %664 = vmatpush1.bf16.msra.mxu0 0
        %665 = vmatprep.subr.bf16.mxu0 0
        %666 = vmatpush1.bf16.msra.mxu0 0
        %667 = vmatprep.subr.bf16.mxu0 0
        %668 = vmatpush1.bf16.msra.mxu0 0
        %669 = vmatprep.subr.bf16.mxu0 0
        %670 = vmatpush1.bf16.msra.mxu0 0
        %671 = vmatprep.subr.bf16.mxu0 0
        %672 = vmatpush1.bf16.msra.mxu0 0
        %673 = vmatprep.subr.bf16.mxu0 0
        %674 = vmatpush1.bf16.msra.mxu0 0
        %675 = vmatprep.subr.bf16.mxu0 0
        %676 = vmatpush1.bf16.msra.mxu0 0
        %677 = vmatprep.subr.bf16.mxu0 0
        %678 = vmatpush1.bf16.msra.mxu0 0
        %679 = vmatprep.subr.bf16.mxu0 0
        %680 = vmatpush1.bf16.msra.mxu0 0
        %681 = vmatprep.subr.bf16.mxu0 0
        %682 = vmatpush1.bf16.msra.mxu0 0
        %683 = vmatprep.subr.bf16.mxu0 0
        %684 = vmatpush1.bf16.msra.mxu0 0
        %685 = vmatprep.subr.bf16.mxu0 0
        %686 = vmatpush1.bf16.msra.mxu0 0
        %687 = vmatprep.subr.bf16.mxu0 0
        %688 = vmatpush1.bf16.msra.mxu0 0
        %689 = vmatprep.subr.bf16.mxu0 0
        %690 = vmatpush1.bf16.msra.mxu0 0
        %691 = vmatprep.subr.bf16.mxu0 0
        %692 = vmatpush1.bf16.msra.mxu0 0
        %693 = vmatprep.mubr.bf16.mxu0 0
        %694 = vmatmul.mubr.bf16.gmra.mrb[0].mxu0 %v650
        %v695 = vpop.f32.mrb[0].mxu0
        %v696 = vadd.f32 %v593, %v695
        %v697 = vpop.f32.mrb[0].mxu0
        %v698 = vpop.f32.mrb[0].mxu0
        %v699 = vadd.f32 %v596, %v698
        %v700 = vpop.f32.mrb[0].mxu0
        %701 = vmatprep.mubr.bf16.mxu0 0
        %702 = vmatmul.mubr.bf16.gmra.mrb[0].mxu0 %v653
        %v703 = vpop.f32.mrb[0].mxu0
        %v704 = vadd.f32 %v601, %v703
        %v705 = vpop.f32.mrb[0].mxu0
        %v706 = vpop.f32.mrb[0].mxu0
        %v707 = vadd.f32 %v604, %v706
        %v708 = vpop.f32.mrb[0].mxu0
        %709 = vmatprep.mubr.bf16.mxu0 0
        %710 = vmatmul.mubr.bf16.gmra.mrb[0].mxu0 %v656
        %v711 = vpop.f32.mrb[0].mxu0
        %v712 = vadd.f32 %v609, %v711
        %v713 = vpop.f32.mrb[0].mxu0
        %v714 = vpop.f32.mrb[0].mxu0
        %v715 = vadd.f32 %v612, %v714
        %v716 = vpop.f32.mrb[0].mxu0
        %717 = vmatprep.mubr.bf16.mxu0 0
        %718 = vmatmul.mubr.bf16.gmra.mrb[0].mxu0 %v659
        %v719 = vpop.f32.mrb[0].mxu0
        %v720 = vadd.f32 %v617, %v719
        %v721 = vpop.f32.mrb[0].mxu0
        %v722 = vpop.f32.mrb[0].mxu0
        %v723 = vadd.f32 %v620, %v722
        %v724 = vpop.f32.mrb[0].mxu0
        %725 = vdwg.mxu0
        %s726 = scalar_lea.vmem [#allocation2], 8
        %v727 = vld [vmem:[%s726] sm:$0xf]
        %v728 = vld [vmem:[%s726 + $0x8] sm:$0xf]
        %v729 = vld [vmem:[%s726 + $0x10] sm:$0xf]
        %v730 = vld [vmem:[%s726 + $0x18] sm:$0xf]
        %v731 = vld [vmem:[%s726 + $0x20] sm:$0xf]
        %v732 = vld [vmem:[%s726 + $0x28] sm:$0xf]
        %v733 = vld [vmem:[%s726 + $0x30] sm:$0xf]
        %v734 = vld [vmem:[%s726 + $0x38] sm:$0xf]
        %s735 = scalar_lea.vmem %s2, 16
        %v736 = vld [vmem:[%s735] sm:$0xf]
        %v737 = vld [vmem:[%s735 + $0x4] sm:$0xf]
        %v746 = vunpack.c.l.b16 %v727
        %v747 = vunpack.c.l.b16 %v728
        %v748 = vunpack.c.l.b16 %v729
        %v749 = vunpack.c.l.b16 %v730
        %v750 = vunpack.c.l.b16 %v731
        %v751 = vunpack.c.l.b16 %v732
        %v752 = vunpack.c.l.b16 %v733
        %v753 = vunpack.c.l.b16 %v734
        %v754 = vpack.c.b16 %v747, %v746
        %v755 = vpack.c.b16 %v749, %v748
        %v756 = vpack.c.b16 %v751, %v750
        %v757 = vpack.c.b16 %v753, %v752
        %v760 = vunpack.c.l.b16 %v736
        %v761 = vunpack.c.l.b16 %v737
        %v762 = vpack.c.b16 %v761, %v760
        %v765 = vsel %vm545, %v754, 0
        %v768 = vsel %vm545, %v755, 0
        %v771 = vsel %vm545, %v756, 0
        %v774 = vsel %vm545, %v757, 0
        %776 = vmatprep.subr.bf16.mxu0 0
        %777 = vmatpush1.bf16.msra.mxu0 %v762
        %778 = vmatprep.subr.bf16.mxu0 0
        %779 = vmatpush1.bf16.msra.mxu0 0
        %780 = vmatprep.subr.bf16.mxu0 0
        %781 = vmatpush1.bf16.msra.mxu0 0
        %782 = vmatprep.subr.bf16.mxu0 0
        %783 = vmatpush1.bf16.msra.mxu0 0
        %784 = vmatprep.subr.bf16.mxu0 0
        %785 = vmatpush1.bf16.msra.mxu0 0
        %786 = vmatprep.subr.bf16.mxu0 0
        %787 = vmatpush1.bf16.msra.mxu0 0
        %788 = vmatprep.subr.bf16.mxu0 0
        %789 = vmatpush1.bf16.msra.mxu0 0
        %790 = vmatprep.subr.bf16.mxu0 0
        %791 = vmatpush1.bf16.msra.mxu0 0
        %792 = vmatprep.subr.bf16.mxu0 0
        %793 = vmatpush1.bf16.msra.mxu0 0
        %794 = vmatprep.subr.bf16.mxu0 0
        %795 = vmatpush1.bf16.msra.mxu0 0
        %796 = vmatprep.subr.bf16.mxu0 0
        %797 = vmatpush1.bf16.msra.mxu0 0
        %798 = vmatprep.subr.bf16.mxu0 0
        %799 = vmatpush1.bf16.msra.mxu0 0
        %800 = vmatprep.subr.bf16.mxu0 0
        %801 = vmatpush1.bf16.msra.mxu0 0
        %802 = vmatprep.subr.bf16.mxu0 0
        %803 = vmatpush1.bf16.msra.mxu0 0
        %804 = vmatprep.subr.bf16.mxu0 0
        %805 = vmatpush1.bf16.msra.mxu0 0
        %806 = vmatprep.subr.bf16.mxu0 0
        %807 = vmatpush1.bf16.msra.mxu0 0
        %808 = vmatprep.mubr.bf16.mxu0 0
        %809 = vmatmul.mubr.bf16.gmra.mrb[0].mxu0 %v765
        %v810 = vpop.f32.mrb[0].mxu0
        %v811 = vadd.f32 0.0, %v810
        %v812 = vpop.f32.mrb[0].mxu0
        %v813 = vpop.f32.mrb[0].mxu0
        %v814 = vadd.f32 0.0, %v813
        %v815 = vpop.f32.mrb[0].mxu0
        %816 = vmatprep.mubr.bf16.mxu0 0
        %817 = vmatmul.mubr.bf16.gmra.mrb[0].mxu0 %v768
        %v818 = vpop.f32.mrb[0].mxu0
        %v819 = vadd.f32 0.0, %v818
        %v820 = vpop.f32.mrb[0].mxu0
        %v821 = vpop.f32.mrb[0].mxu0
        %v822 = vadd.f32 0.0, %v821
        %v823 = vpop.f32.mrb[0].mxu0
        %824 = vmatprep.mubr.bf16.mxu0 0
        %825 = vmatmul.mubr.bf16.gmra.mrb[0].mxu0 %v771
        %v826 = vpop.f32.mrb[0].mxu0
        %v827 = vadd.f32 0.0, %v826
        %v828 = vpop.f32.mrb[0].mxu0
        %v829 = vpop.f32.mrb[0].mxu0
        %v830 = vadd.f32 0.0, %v829
        %v831 = vpop.f32.mrb[0].mxu0
        %832 = vmatprep.mubr.bf16.mxu0 0
        %833 = vmatmul.mubr.bf16.gmra.mrb[0].mxu0 %v774
        %v834 = vpop.f32.mrb[0].mxu0
        %v835 = vadd.f32 0.0, %v834
        %v836 = vpop.f32.mrb[0].mxu0
        %v837 = vpop.f32.mrb[0].mxu0
        %v838 = vadd.f32 0.0, %v837
        %v839 = vpop.f32.mrb[0].mxu0
        %840 = vdwg.mxu0
        %v841 = vadd.f32 %v696, %v811
        %v842 = vadd.f32 %v699, %v814
        %v843 = vadd.f32 %v704, %v819
        %v844 = vadd.f32 %v707, %v822
        %v845 = vadd.f32 %v712, %v827
        %v846 = vadd.f32 %v715, %v830
        %v847 = vadd.f32 %v720, %v835
        %v848 = vadd.f32 %v723, %v838
        %v849 = vld [vmem:[%s726] sm:$0xf]
        %v850 = vld [vmem:[%s726 + $0x4] sm:$0x1]
        %v851 = vld [vmem:[%s726 + $0x8] sm:$0xf]
        %v852 = vld [vmem:[%s726 + $0xc] sm:$0x1]
        %v853 = vld [vmem:[%s726 + $0x10] sm:$0xf]
        %v854 = vld [vmem:[%s726 + $0x14] sm:$0x1]
        %v855 = vld [vmem:[%s726 + $0x18] sm:$0xf]
        %v856 = vld [vmem:[%s726 + $0x1c] sm:$0x1]
        %v857 = vld [vmem:[%s726 + $0x20] sm:$0xf]
        %v858 = vld [vmem:[%s726 + $0x24] sm:$0x1]
        %v859 = vld [vmem:[%s726 + $0x28] sm:$0xf]
        %v860 = vld [vmem:[%s726 + $0x2c] sm:$0x1]
        %v861 = vld [vmem:[%s726 + $0x30] sm:$0xf]
        %v862 = vld [vmem:[%s726 + $0x34] sm:$0x1]
        %v863 = vld [vmem:[%s726 + $0x38] sm:$0xf]
        %v864 = vld [vmem:[%s726 + $0x3c] sm:$0x1]
        %v866 = vshrl.u32 %v849, 16
        %v868 = vrot.slane %v866, 4
        %v869 = vshll.u32 %v849, 16
        %v871 = vrot.slane %v869, 5
        %v872 = vor.u32 %v868, %v871
        %v873 = vrot.slane %v872, 4
        %v875 = vshll.u32 %v850, 16
        %v877 = vrot.slane %v875, 5
        %v878 = vsel %vm411, %v873, %v877
        %v880 = vshrl.u32 %v851, 16
        %v882 = vrot.slane %v880, 4
        %v883 = vshll.u32 %v851, 16
        %v885 = vrot.slane %v883, 5
        %v886 = vor.u32 %v882, %v885
        %v887 = vrot.slane %v886, 4
        %v889 = vshll.u32 %v852, 16
        %v891 = vrot.slane %v889, 5
        %v892 = vsel %vm411, %v887, %v891
        %v894 = vshrl.u32 %v853, 16
        %v896 = vrot.slane %v894, 4
        %v897 = vshll.u32 %v853, 16
        %v899 = vrot.slane %v897, 5
        %v900 = vor.u32 %v896, %v899
        %v901 = vrot.slane %v900, 4
        %v903 = vshll.u32 %v854, 16
        %v905 = vrot.slane %v903, 5
        %v906 = vsel %vm411, %v901, %v905
        %v908 = vshrl.u32 %v855, 16
        %v910 = vrot.slane %v908, 4
        %v911 = vshll.u32 %v855, 16
        %v913 = vrot.slane %v911, 5
        %v914 = vor.u32 %v910, %v913
        %v915 = vrot.slane %v914, 4
        %v917 = vshll.u32 %v856, 16
        %v919 = vrot.slane %v917, 5
        %v920 = vsel %vm411, %v915, %v919
        %v922 = vshrl.u32 %v857, 16
        %v924 = vrot.slane %v922, 4
        %v925 = vshll.u32 %v857, 16
        %v927 = vrot.slane %v925, 5
        %v928 = vor.u32 %v924, %v927
        %v929 = vrot.slane %v928, 4
        %v931 = vshll.u32 %v858, 16
        %v933 = vrot.slane %v931, 5
        %v934 = vsel %vm411, %v929, %v933
        %v936 = vshrl.u32 %v859, 16
        %v938 = vrot.slane %v936, 4
        %v939 = vshll.u32 %v859, 16
        %v941 = vrot.slane %v939, 5
        %v942 = vor.u32 %v938, %v941
        %v943 = vrot.slane %v942, 4
        %v945 = vshll.u32 %v860, 16
        %v947 = vrot.slane %v945, 5
        %v948 = vsel %vm411, %v943, %v947
        %v950 = vshrl.u32 %v861, 16
        %v952 = vrot.slane %v950, 4
        %v953 = vshll.u32 %v861, 16
        %v955 = vrot.slane %v953, 5
        %v956 = vor.u32 %v952, %v955
        %v957 = vrot.slane %v956, 4
        %v959 = vshll.u32 %v862, 16
        %v961 = vrot.slane %v959, 5
        %v962 = vsel %vm411, %v957, %v961
        %v964 = vshrl.u32 %v863, 16
        %v966 = vrot.slane %v964, 4
        %v967 = vshll.u32 %v863, 16
        %v969 = vrot.slane %v967, 5
        %v970 = vor.u32 %v966, %v969
        %v971 = vrot.slane %v970, 4
        %v973 = vshll.u32 %v864, 16
        %v975 = vrot.slane %v973, 5
        %v976 = vsel %vm411, %v971, %v975
        %s977 = scalar_lea.vmem %s2, 24
        %v978 = vld [vmem:[%s977] sm:$0xf]
        %v979 = vld [vmem:[%s977 + $0x4] sm:$0xf]
        %v980 = vunpack.c.l.b16 %v878
        %v981 = vunpack.c.l.b16 %v892
        %v982 = vunpack.c.l.b16 %v906
        %v983 = vunpack.c.l.b16 %v920
        %v984 = vunpack.c.l.b16 %v934
        %v985 = vunpack.c.l.b16 %v948
        %v986 = vunpack.c.l.b16 %v962
        %v987 = vunpack.c.l.b16 %v976
        %v988 = vpack.c.b16 %v981, %v980
        %v989 = vpack.c.b16 %v983, %v982
        %v990 = vpack.c.b16 %v985, %v984
        %v991 = vpack.c.b16 %v987, %v986
        %v994 = vunpack.c.l.b16 %v978
        %v995 = vunpack.c.l.b16 %v979
        %v996 = vpack.c.b16 %v995, %v994
        %v999 = vsel %vm545, %v988, 0
        %v1002 = vsel %vm545, %v989, 0
        %v1005 = vsel %vm545, %v990, 0
        %v1008 = vsel %vm545, %v991, 0
        %1010 = vmatprep.subr.bf16.mxu0 0
        %1011 = vmatpush1.bf16.msra.mxu0 %v996
        %1012 = vmatprep.subr.bf16.mxu0 0
        %1013 = vmatpush1.bf16.msra.mxu0 0
        %1014 = vmatprep.subr.bf16.mxu0 0
        %1015 = vmatpush1.bf16.msra.mxu0 0
        %1016 = vmatprep.subr.bf16.mxu0 0
        %1017 = vmatpush1.bf16.msra.mxu0 0
        %1018 = vmatprep.subr.bf16.mxu0 0
        %1019 = vmatpush1.bf16.msra.mxu0 0
        %1020 = vmatprep.subr.bf16.mxu0 0
        %1021 = vmatpush1.bf16.msra.mxu0 0
        %1022 = vmatprep.subr.bf16.mxu0 0
        %1023 = vmatpush1.bf16.msra.mxu0 0
        %1024 = vmatprep.subr.bf16.mxu0 0
        %1025 = vmatpush1.bf16.msra.mxu0 0
        %1026 = vmatprep.subr.bf16.mxu0 0
        %1027 = vmatpush1.bf16.msra.mxu0 0
        %1028 = vmatprep.subr.bf16.mxu0 0
        %1029 = vmatpush1.bf16.msra.mxu0 0
        %1030 = vmatprep.subr.bf16.mxu0 0
        %1031 = vmatpush1.bf16.msra.mxu0 0
        %1032 = vmatprep.subr.bf16.mxu0 0
        %1033 = vmatpush1.bf16.msra.mxu0 0
        %1034 = vmatprep.subr.bf16.mxu0 0
        %1035 = vmatpush1.bf16.msra.mxu0 0
        %1036 = vmatprep.subr.bf16.mxu0 0
        %1037 = vmatpush1.bf16.msra.mxu0 0
        %1038 = vmatprep.subr.bf16.mxu0 0
        %1039 = vmatpush1.bf16.msra.mxu0 0
        %1040 = vmatprep.subr.bf16.mxu0 0
        %1041 = vmatpush1.bf16.msra.mxu0 0
        %1042 = vmatprep.mubr.bf16.mxu0 0
        %1043 = vmatmul.mubr.bf16.gmra.mrb[0].mxu0 %v999
        %v1044 = vpop.f32.mrb[0].mxu0
        %v1045 = vadd.f32 0.0, %v1044
        %v1046 = vpop.f32.mrb[0].mxu0
        %v1047 = vpop.f32.mrb[0].mxu0
        %v1048 = vadd.f32 0.0, %v1047
        %v1049 = vpop.f32.mrb[0].mxu0
        %1050 = vmatprep.mubr.bf16.mxu0 0
        %1051 = vmatmul.mubr.bf16.gmra.mrb[0].mxu0 %v1002
        %v1052 = vpop.f32.mrb[0].mxu0
        %v1053 = vadd.f32 0.0, %v1052
        %v1054 = vpop.f32.mrb[0].mxu0
        %v1055 = vpop.f32.mrb[0].mxu0
        %v1056 = vadd.f32 0.0, %v1055
        %v1057 = vpop.f32.mrb[0].mxu0
        %1058 = vmatprep.mubr.bf16.mxu0 0
        %1059 = vmatmul.mubr.bf16.gmra.mrb[0].mxu0 %v1005
        %v1060 = vpop.f32.mrb[0].mxu0
        %v1061 = vadd.f32 0.0, %v1060
        %v1062 = vpop.f32.mrb[0].mxu0
        %v1063 = vpop.f32.mrb[0].mxu0
        %v1064 = vadd.f32 0.0, %v1063
        %v1065 = vpop.f32.mrb[0].mxu0
        %1066 = vmatprep.mubr.bf16.mxu0 0
        %1067 = vmatmul.mubr.bf16.gmra.mrb[0].mxu0 %v1008
        %v1068 = vpop.f32.mrb[0].mxu0
        %v1069 = vadd.f32 0.0, %v1068
        %v1070 = vpop.f32.mrb[0].mxu0
        %v1071 = vpop.f32.mrb[0].mxu0
        %v1072 = vadd.f32 0.0, %v1071
        %v1073 = vpop.f32.mrb[0].mxu0
        %1074 = vdwg.mxu0
        %v1075 = vadd.f32 %v841, %v1045
        %v1076 = vadd.f32 %v842, %v1048
        %v1077 = vadd.f32 %v843, %v1053
        %v1078 = vadd.f32 %v844, %v1056
        %v1079 = vadd.f32 %v845, %v1061
        %v1080 = vadd.f32 %v846, %v1064
        %v1081 = vadd.f32 %v847, %v1069
        %v1082 = vadd.f32 %v848, %v1072
        %v1083 = vunpack.c.l.bf16 %v391
        %v1084 = vunpack.c.l.bf16 %v392
        %v1085 = vunpack.c.l.bf16 %v393
        %v1086 = vunpack.c.l.bf16 %v394
        %v1087 = vunpack.c.l.bf16 %v395
        %v1088 = vunpack.c.l.bf16 %v396
        %v1089 = vunpack.c.l.bf16 %v397
        %v1090 = vunpack.c.l.bf16 %v398
        %v1091 = vunpack.c.l.bf16 %v401
        %v1092 = vunpack.c.l.bf16 %v402
        %v1093 = vunpack.c.l.bf16 %v403
        %v1094 = vunpack.c.l.bf16 %v404
        %v1095 = vunpack.c.l.bf16 %v405
        %v1096 = vunpack.c.l.bf16 %v406
        %v1097 = vunpack.c.l.bf16 %v407
        %v1098 = vunpack.c.l.bf16 %v408
        %v1099 = vunpack.c.l.bf16 %v727
        %v1100 = vunpack.c.l.bf16 %v728
        %v1101 = vunpack.c.l.bf16 %v729
        %v1102 = vunpack.c.l.bf16 %v730
        %v1103 = vunpack.c.l.bf16 %v731
        %v1104 = vunpack.c.l.bf16 %v732
        %v1105 = vunpack.c.l.bf16 %v733
        %v1106 = vunpack.c.l.bf16 %v734
        %v1107 = vunpack.c.l.bf16 %v849
        %v1108 = vunpack.c.l.bf16 %v850
        %v1109 = vunpack.c.l.bf16 %v851
        %v1110 = vunpack.c.l.bf16 %v852
        %v1111 = vunpack.c.l.bf16 %v853
        %v1112 = vunpack.c.l.bf16 %v854
        %v1113 = vunpack.c.l.bf16 %v855
        %v1114 = vunpack.c.l.bf16 %v856
        %v1115 = vunpack.c.l.bf16 %v857
        %v1116 = vunpack.c.l.bf16 %v858
        %v1117 = vunpack.c.l.bf16 %v859
        %v1118 = vunpack.c.l.bf16 %v860
        %v1119 = vunpack.c.l.bf16 %v861
        %v1120 = vunpack.c.l.bf16 %v862
        %v1121 = vunpack.c.l.bf16 %v863
        %v1122 = vunpack.c.l.bf16 %v864
        %vm1139 = vcmask 1046528
        %v1140 = vrot.slane %v1083, 1
        %v1141 = vrot.slane %v1091, 1
        %v1142 = vsel %vm1139, %v1140, %v1141
        %v1143 = vrot.slane %v1084, 1
        %v1144 = vrot.slane %v1092, 1
        %v1145 = vsel %vm1139, %v1143, %v1144
        %v1146 = vrot.slane %v1085, 1
        %v1147 = vrot.slane %v1093, 1
        %v1148 = vsel %vm1139, %v1146, %v1147
        %v1149 = vrot.slane %v1086, 1
        %v1150 = vrot.slane %v1094, 1
        %v1151 = vsel %vm1139, %v1149, %v1150
        %v1152 = vrot.slane %v1087, 1
        %v1153 = vrot.slane %v1095, 1
        %v1154 = vsel %vm1139, %v1152, %v1153
        %v1155 = vrot.slane %v1088, 1
        %v1156 = vrot.slane %v1096, 1
        %v1157 = vsel %vm1139, %v1155, %v1156
        %v1158 = vrot.slane %v1089, 1
        %v1159 = vrot.slane %v1097, 1
        %v1160 = vsel %vm1139, %v1158, %v1159
        %v1161 = vrot.slane %v1090, 1
        %v1162 = vrot.slane %v1098, 1
        %v1163 = vsel %vm1139, %v1161, %v1162
        %1164 = vrot.lane.b32.xlu0 %v1142, 4
        %v1165 = vpop.permute.xlu0 %1164
        %1166 = vrot.lane.b32.xlu0 %v1145, 4
        %v1167 = vpop.permute.xlu0 %1166
        %1168 = vrot.lane.b32.xlu0 %v1148, 4
        %v1169 = vpop.permute.xlu0 %1168
        %1170 = vrot.lane.b32.xlu0 %v1151, 4
        %v1171 = vpop.permute.xlu0 %1170
        %1172 = vrot.lane.b32.xlu0 %v1154, 4
        %v1173 = vpop.permute.xlu0 %1172
        %1174 = vrot.lane.b32.xlu0 %v1157, 4
        %v1175 = vpop.permute.xlu0 %1174
        %1176 = vrot.lane.b32.xlu0 %v1160, 4
        %v1177 = vpop.permute.xlu0 %1176
        %1178 = vrot.lane.b32.xlu0 %v1163, 4
        %v1179 = vpop.permute.xlu0 %1178
        %v1188 = vmax.f32 %v1083, %v1165
        %v1189 = vmax.f32 %v1084, %v1167
        %v1190 = vmax.f32 %v1085, %v1169
        %v1191 = vmax.f32 %v1086, %v1171
        %v1192 = vmax.f32 %v1087, %v1173
        %v1193 = vmax.f32 %v1088, %v1175
        %v1194 = vmax.f32 %v1089, %v1177
        %v1195 = vmax.f32 %v1090, %v1179
        %v1212 = vrot.slane %v1107, 1
        %v1213 = vrot.slane %v1108, 1
        %v1214 = vsel %vm1139, %v1212, %v1213
        %v1215 = vrot.slane %v1109, 1
        %v1216 = vrot.slane %v1110, 1
        %v1217 = vsel %vm1139, %v1215, %v1216
        %v1218 = vrot.slane %v1111, 1
        %v1219 = vrot.slane %v1112, 1
        %v1220 = vsel %vm1139, %v1218, %v1219
        %v1221 = vrot.slane %v1113, 1
        %v1222 = vrot.slane %v1114, 1
        %v1223 = vsel %vm1139, %v1221, %v1222
        %v1224 = vrot.slane %v1115, 1
        %v1225 = vrot.slane %v1116, 1
        %v1226 = vsel %vm1139, %v1224, %v1225
        %v1227 = vrot.slane %v1117, 1
        %v1228 = vrot.slane %v1118, 1
        %v1229 = vsel %vm1139, %v1227, %v1228
        %v1230 = vrot.slane %v1119, 1
        %v1231 = vrot.slane %v1120, 1
        %v1232 = vsel %vm1139, %v1230, %v1231
        %v1233 = vrot.slane %v1121, 1
        %v1234 = vrot.slane %v1122, 1
        %v1235 = vsel %vm1139, %v1233, %v1234
        %1236 = vrot.lane.b32.xlu0 %v1214, 4
        %v1237 = vpop.permute.xlu0 %1236
        %1238 = vrot.lane.b32.xlu0 %v1217, 4
        %v1239 = vpop.permute.xlu0 %1238
        %1240 = vrot.lane.b32.xlu0 %v1220, 4
        %v1241 = vpop.permute.xlu0 %1240
        %1242 = vrot.lane.b32.xlu0 %v1223, 4
        %v1243 = vpop.permute.xlu0 %1242
        %1244 = vrot.lane.b32.xlu0 %v1226, 4
        %v1245 = vpop.permute.xlu0 %1244
        %1246 = vrot.lane.b32.xlu0 %v1229, 4
        %v1247 = vpop.permute.xlu0 %1246
        %1248 = vrot.lane.b32.xlu0 %v1232, 4
        %v1249 = vpop.permute.xlu0 %1248
        %1250 = vrot.lane.b32.xlu0 %v1235, 4
        %v1251 = vpop.permute.xlu0 %1250
        %v1260 = vmax.f32 %v1099, %v1237
        %v1261 = vmax.f32 %v1100, %v1239
        %v1262 = vmax.f32 %v1101, %v1241
        %v1263 = vmax.f32 %v1102, %v1243
        %v1264 = vmax.f32 %v1103, %v1245
        %v1265 = vmax.f32 %v1104, %v1247
        %v1266 = vmax.f32 %v1105, %v1249
        %v1267 = vmax.f32 %v1106, %v1251
        %1276 = vrot.lane.b32.xlu0 %v1260, 8
        %v1277 = vpop.permute.xlu0 %1276
        %1278 = vrot.lane.b32.xlu0 %v1261, 8
        %v1279 = vpop.permute.xlu0 %1278
        %1280 = vrot.lane.b32.xlu0 %v1262, 8
        %v1281 = vpop.permute.xlu0 %1280
        %1282 = vrot.lane.b32.xlu0 %v1263, 8
        %v1283 = vpop.permute.xlu0 %1282
        %1284 = vrot.lane.b32.xlu0 %v1264, 8
        %v1285 = vpop.permute.xlu0 %1284
        %1286 = vrot.lane.b32.xlu0 %v1265, 8
        %v1287 = vpop.permute.xlu0 %1286
        %1288 = vrot.lane.b32.xlu0 %v1266, 8
        %v1289 = vpop.permute.xlu0 %1288
        %1290 = vrot.lane.b32.xlu0 %v1267, 8
        %v1291 = vpop.permute.xlu0 %1290
        %v1300 = vmax.f32 %v1188, %v1277
        %v1301 = vmax.f32 %v1189, %v1279
        %v1302 = vmax.f32 %v1190, %v1281
        %v1303 = vmax.f32 %v1191, %v1283
        %v1304 = vmax.f32 %v1192, %v1285
        %v1305 = vmax.f32 %v1193, %v1287
        %v1306 = vmax.f32 %v1194, %v1289
        %v1307 = vmax.f32 %v1195, %v1291
        %v1308 = vpack.c.bf16 %v1300, %v1300
        %v1309 = vpack.c.bf16 %v1301, %v1301
        %v1310 = vpack.c.bf16 %v1302, %v1302
        %v1311 = vpack.c.bf16 %v1303, %v1303
        %v1312 = vpack.c.bf16 %v1304, %v1304
        %v1313 = vpack.c.bf16 %v1305, %v1305
        %v1314 = vpack.c.bf16 %v1306, %v1306
        %v1315 = vpack.c.bf16 %v1307, %v1307
        %v1316 = vld [vmem:[%s3] sm:$0x3]
        %v1325 = vunpack.c.l.b16 %v1308
        %v1326 = vunpack.c.l.b16 %v1309
        %v1327 = vunpack.c.l.b16 %v1310
        %v1328 = vunpack.c.l.b16 %v1311
        %v1329 = vunpack.c.l.b16 %v1312
        %v1330 = vunpack.c.l.b16 %v1313
        %v1331 = vunpack.c.l.b16 %v1314
        %v1332 = vunpack.c.l.b16 %v1315
        %v1333 = vpack.c.b16 %v1326, %v1325
        %v1334 = vpack.c.b16 %v1328, %v1327
        %v1335 = vpack.c.b16 %v1330, %v1329
        %v1336 = vpack.c.b16 %v1332, %v1331
        %1337 = vrot.lane.b32.xlu0 %v1333, 116
        %v1338 = vpop.permute.xlu0 %1337
        %1339 = vrot.lane.b32.xlu0 %v1334, 116
        %v1340 = vpop.permute.xlu0 %1339
        %1341 = vrot.lane.b32.xlu0 %v1335, 116
        %v1342 = vpop.permute.xlu0 %1341
        %1343 = vrot.lane.b32.xlu0 %v1336, 116
        %v1344 = vpop.permute.xlu0 %1343
        %vm1345 = vcmask 31744
        %v1347 = vsel %vm1345, %v1338, 0
        %v1350 = vsel %vm1345, %v1340, 0
        %v1353 = vsel %vm1345, %v1342, 0
        %v1356 = vsel %vm1345, %v1344, 0
        %vm1358 = vcmask 1041408
        %v1360 = vsel %vm1358, %v1316, 0
        %1362 = vmatprep.subr.bf16.mxu0 0
        %1363 = vmatpush1.bf16.msra.mxu0 %v1360
        %1364 = vmatprep.subr.bf16.mxu0 0
        %1365 = vmatpush1.bf16.msra.mxu0 0
        %1366 = vmatprep.subr.bf16.mxu0 0
        %1367 = vmatpush1.bf16.msra.mxu0 0
        %1368 = vmatprep.subr.bf16.mxu0 0
        %1369 = vmatpush1.bf16.msra.mxu0 0
        %1370 = vmatprep.subr.bf16.mxu0 0
        %1371 = vmatpush1.bf16.msra.mxu0 0
        %1372 = vmatprep.subr.bf16.mxu0 0
        %1373 = vmatpush1.bf16.msra.mxu0 0
        %1374 = vmatprep.subr.bf16.mxu0 0
        %1375 = vmatpush1.bf16.msra.mxu0 0
        %1376 = vmatprep.subr.bf16.mxu0 0
        %1377 = vmatpush1.bf16.msra.mxu0 0
        %1378 = vmatprep.subr.bf16.mxu0 0
        %1379 = vmatpush1.bf16.msra.mxu0 0
        %1380 = vmatprep.subr.bf16.mxu0 0
        %1381 = vmatpush1.bf16.msra.mxu0 0
        %1382 = vmatprep.subr.bf16.mxu0 0
        %1383 = vmatpush1.bf16.msra.mxu0 0
        %1384 = vmatprep.subr.bf16.mxu0 0
        %1385 = vmatpush1.bf16.msra.mxu0 0
        %1386 = vmatprep.subr.bf16.mxu0 0
        %1387 = vmatpush1.bf16.msra.mxu0 0
        %1388 = vmatprep.subr.bf16.mxu0 0
        %1389 = vmatpush1.bf16.msra.mxu0 0
        %1390 = vmatprep.subr.bf16.mxu0 0
        %1391 = vmatpush1.bf16.msra.mxu0 0
        %1392 = vmatprep.subr.bf16.mxu0 0
        %1393 = vmatpush1.bf16.msra.mxu0 0
        %1394 = vmatprep.mubr.bf16.mxu0 0
        %1395 = vmatmul.mubr.bf16.gmra.mrb[0].mxu0 %v1347
        %v1396 = vpop.f32.mrb[0].mxu0
        %v1397 = vadd.f32 0.0, %v1396
        %v1398 = vpop.f32.mrb[0].mxu0
        %v1399 = vpop.f32.mrb[0].mxu0
        %v1400 = vadd.f32 0.0, %v1399
        %v1401 = vpop.f32.mrb[0].mxu0
        %1402 = vmatprep.mubr.bf16.mxu0 0
        %1403 = vmatmul.mubr.bf16.gmra.mrb[0].mxu0 %v1350
        %v1404 = vpop.f32.mrb[0].mxu0
        %v1405 = vadd.f32 0.0, %v1404
        %v1406 = vpop.f32.mrb[0].mxu0
        %v1407 = vpop.f32.mrb[0].mxu0
        %v1408 = vadd.f32 0.0, %v1407
        %v1409 = vpop.f32.mrb[0].mxu0
        %1410 = vmatprep.mubr.bf16.mxu0 0
        %1411 = vmatmul.mubr.bf16.gmra.mrb[0].mxu0 %v1353
        %v1412 = vpop.f32.mrb[0].mxu0
        %v1413 = vadd.f32 0.0, %v1412
        %v1414 = vpop.f32.mrb[0].mxu0
        %v1415 = vpop.f32.mrb[0].mxu0
        %v1416 = vadd.f32 0.0, %v1415
        %v1417 = vpop.f32.mrb[0].mxu0
        %1418 = vmatprep.mubr.bf16.mxu0 0
        %1419 = vmatmul.mubr.bf16.gmra.mrb[0].mxu0 %v1356
        %v1420 = vpop.f32.mrb[0].mxu0
        %v1421 = vadd.f32 0.0, %v1420
        %v1422 = vpop.f32.mrb[0].mxu0
        %v1423 = vpop.f32.mrb[0].mxu0
        %v1424 = vadd.f32 0.0, %v1423
        %v1425 = vpop.f32.mrb[0].mxu0
        %1426 = vdwg.mxu0
        %v1427 = vadd.f32 %v1075, %v1397
        %v1428 = vadd.f32 %v1076, %v1400
        %v1429 = vadd.f32 %v1077, %v1405
        %v1430 = vadd.f32 %v1078, %v1408
        %v1431 = vadd.f32 %v1079, %v1413
        %v1432 = vadd.f32 %v1080, %v1416
        %v1433 = vadd.f32 %v1081, %v1421
        %v1434 = vadd.f32 %v1082, %v1424
        %v1435 = vld [vmem:[%s4] sm:$0x1]
        %v1437 = vlaneseq
        %v1438 = vshrl.u32 %v1437, 7
        %v1439 = vsub.s32 0, %v1438
        %v1440 = vrot.slane %v1435, %v1439
        %v1442 = vadd.f32 %v1427, %v1440
        %v1443 = vadd.f32 %v1428, %v1440
        %v1444 = vadd.f32 %v1429, %v1440
        %v1445 = vadd.f32 %v1430, %v1440
        %v1446 = vadd.f32 %v1431, %v1440
        %v1447 = vadd.f32 %v1432, %v1440
        %v1448 = vadd.f32 %v1433, %v1440
        %v1449 = vadd.f32 %v1434, %v1440
        %v1450 = vmax.f32 %v1442, 0.0
        %v1451 = vmax.f32 %v1443, 0.0
        %v1452 = vmax.f32 %v1444, 0.0
        %v1453 = vmax.f32 %v1445, 0.0
        %v1454 = vmax.f32 %v1446, 0.0
        %v1455 = vmax.f32 %v1447, 0.0
        %v1456 = vmax.f32 %v1448, 0.0
        %v1457 = vmax.f32 %v1449, 0.0
        %1458 = vst.msk [vmem:[%s294] sm:$0xff] %vm545, %v1450
        %1459 = vst.msk [vmem:[%s294 + $0x8] sm:$0xff] %vm545, %v1451
        %1460 = vst.msk [vmem:[%s294 + $0x10] sm:$0xff] %vm545, %v1452
        %1461 = vst.msk [vmem:[%s294 + $0x18] sm:$0xff] %vm545, %v1453
        %1462 = vst.msk [vmem:[%s294 + $0x20] sm:$0xff] %vm545, %v1454
        %1463 = vst.msk [vmem:[%s294 + $0x28] sm:$0xff] %vm545, %v1455
        %1464 = vst.msk [vmem:[%s294 + $0x30] sm:$0xff] %vm545, %v1456
        %1465 = vst.msk [vmem:[%s294 + $0x38] sm:$0xff] %vm545, %v1457
        %s1466 = sand.u32 %s164, 1
        %s1467 = scalar_lea.sflag [#allocation4], %s1466
        %s1468 = sand.u32 %s164, 1
        %s1469 = smul.addr %s1468, 64
        %s1470 = scalar_lea.vmem [#allocation3], %s1469
        // Predicated region
        $region41: #{downsampling_block.1} parent=39 // pred_check
          %p1471 = pneg %p174
        $region42: #{downsampling_block.1} parent=39 // pred_check_branch
          %1473 = sbr.rel (%p1471) target = $region44
        $region43: #{downsampling_block.1} parent=39 // pred_region
          %s1474 = sadd.s32 %s23, %s24
          %s1475 = smul.u32 8, %s1474
          %s1477 = ssub.s32 1024, 1024
          %1478 = vsyncadd %s1467, %s1477
          %s1479 = smul.addr %s1475, 128
          %s1480 = scalar_lea.hbm %s5, %s1479
          %s1481 = sshll.u32 %s1470, 4
          %s1482 = int_to_ptr.vmem [resolvable:$true] %s1481
          %1487 = dma.vmem_to_hbm [thread:$0]  %s1482, 1024, %s1480, %s1467, 128, 128, 8
        $region44: #{downsampling_block.1} parent=39 // pred_fallthru
          _
      $region40: #{downsampling_block.1} parent=5 // pred_fallthru
        _
      %p1488 = scmp.le.s32.totalorder 2, %s14
      // Predicated region
      $region45: #{downsampling_block.1} parent=5 // pred_check
        %p1489 = pneg %p1488
      $region46: #{downsampling_block.1} parent=5 // pred_check_branch
        %1491 = sbr.rel (%p1489) target = $region48
      $region47: #{downsampling_block.1} parent=5 // pred_region
        %s1492 = ssub.s32 %s14, 2
        // Predicated region
        $region49: #{downsampling_block.1} parent=47 // pred_check
          %p1493 = pneg %p180
        $region50: #{downsampling_block.1} parent=47 // pred_check_branch
          %1495 = sbr.rel (%p1493) target = $region52
        $region51: #{downsampling_block.1} parent=47 // pred_region
          %s1496 = sand.u32 %s165, 1
          %s1497 = scalar_lea.sflag [#allocation4], %s1496
          %s1498 = sand.u32 %s165, 1
          %s1499 = smul.addr %s1498, 64
          %s1500 = scalar_lea.vmem [#allocation3], %s1499
          %1501 = dma.done %s1497, 1024
        $region52: #{downsampling_block.1} parent=47 // pred_fallthru
          _
      $region48: #{downsampling_block.1} parent=5 // pred_fallthru
        _
    $region6: #{downsampling_block.1} parent=1 // loop_footer
      %s18 = sadd.s32 1, %s14
    $region7: #{downsampling_block.1} parent=1 // loop_footer_branch
      %13 = sbr.rel target = $region3
    $region8: #{downsampling_block.1} parent=1 // loop_exit
      _
    %1502 = vsyncpa [#allocation4], 1
    %s1503 = scalar_lea.sflag [#allocation4], 1
    %1504 = vsyncpa %s1503, 1

</llo_original>
